<compile_context>
chip_gen: v7x
topology: tpu7x:2x2x1
jax: 0.10.0
libtpu: 0.0.40
codegen_flags: <defaults>
</compile_context>

<pallas_src>
import functools

import jax
import jax.numpy as jnp
import numpy as np
from jax.experimental import pallas as pl
from jax.experimental.pallas import tpu as pltpu

TEMPERATURE = 0.5          # cfg.LOSS.TEMPERATURE (deterministic synthetic value)
GAMMA_NEG = 4
GAMMA_POS = 1
CLIP = 0.05
EPS = 1e-8
NUM_OT_ITERS = 5

_LANE = 128
_SUBLANE_BF16 = 16         # full bf16 vreg packing + taller MXU M
_MAX_CLASS_TILE = 512      # class (lane) tile per grid step; with B<=256, D<=1024
                           # bf16 operands this fits v7x's 32 MiB scoped VMEM with
                           # double buffering.  TODO(synk): drop to 256 / raise
                           # pipeline depth (pl.Buffered(3)) on v5e.
_NEG_BIG = -1e30


def _round_up(x, m):
    return (x + m - 1) // m * m


def _ipow(x, n):
    """Static integer power via binary exponentiation (square-of-square)."""
    n = int(n)
    if n == 0:
        return jnp.ones_like(x)
    acc, result = x, None
    while n:
        if n & 1:
            result = acc if result is None else result * acc
        n >>= 1
        if n:
            acc = acc * acc
    return result


# --------------------------------------------------------------------------
# Fused, class-tiled kernel: sim matmul + multiclass OT loss + multilabel ASL
# --------------------------------------------------------------------------
def _mixed_ot_kernel(feat_ref, ml_text_ref, mc_text_ref, ml_tgt_ref, mc_tgt_ref,
                     dsi_ref, ml_sim_ref, mc_sim_ref, loss_ref,
                     ml_acc, dot_acc, rowsum_acc, run_max, run_sum, *,
                     inv_temp, b_real, n_ml, n_mc, t_ml, t_mc,
                     n_ml_tiles, n_mc_tiles,
                     gamma_neg, gamma_pos, clip, eps, num_iters):
    k = pl.program_id(0)
    num_tiles = n_ml_tiles + n_mc_tiles

    @pl.when(k == 0)
    def _init():
        ml_acc[...] = jnp.zeros(ml_acc.shape, jnp.float32)
        dot_acc[...] = jnp.zeros(dot_acc.shape, jnp.float32)
        rowsum_acc[...] = jnp.zeros(rowsum_acc.shape, jnp.float32)
        run_max[...] = jnp.full(run_max.shape, _NEG_BIG, jnp.float32)
        run_sum[...] = jnp.zeros(run_sum.shape, jnp.float32)

    feat = feat_ref[...]                                   # (b_pad, d_pad) bf16
    b_pad = feat.shape[0]
    row_ids = jax.lax.broadcasted_iota(jnp.int32, (b_pad, 1), 0)
    row_valid_b = row_ids < b_real

    # ---------------- multilabel (ASL) class tiles ------------------------
    @pl.when(k < n_ml_tiles)
    def _ml_step():
        x = jnp.dot(feat, ml_text_ref[...],
                    preferred_element_type=jnp.float32) * inv_temp
        ml_sim_ref[...] = x                                # lane-dense store
        col = k * t_ml + jax.lax.broadcasted_iota(jnp.int32, (b_pad, t_ml), 1)
        valid = jnp.logical_and(col < n_ml, row_valid_b)
        y = ml_tgt_ref[...].astype(jnp.float32)
        xs_pos = pl.reciprocal(1.0 + jnp.exp(-x), approx=True)   # sigmoid (EUP)
        xs_neg = 1.0 - xs_pos
        if clip is not None and clip > 0:
            xs_neg = jnp.minimum(xs_neg + clip, 1.0)
        is_pos = y > 0.5
        # y is binary -> single fused log per element.
        log_term = jnp.log(jnp.maximum(jnp.where(is_pos, xs_pos, xs_neg), eps))
        if gamma_neg > 0 or gamma_pos > 0:
            base = 1.0 - xs_pos * y - xs_neg * (1.0 - y)
            w = jnp.where(is_pos, _ipow(base, gamma_pos), _ipow(base, gamma_neg))
            contrib = log_term * w
        else:
            contrib = log_term
        contrib = jnp.where(valid, contrib, 0.0)
        ml_acc[...] += jnp.sum(contrib, keepdims=True)

    # ---------------- multiclass (OT) class tiles -------------------------
    # Streaming logsumexp over class tiles; per-row Sinkhorn done at finalize.
    @pl.when(k >= n_ml_tiles)
    def _mc_step():
        j = k - n_ml_tiles
        x = jnp.dot(feat, mc_text_ref[...],
                    preferred_element_type=jnp.float32) * inv_temp
        mc_sim_ref[...] = x
        col = j * t_mc + jax.lax.broadcasted_iota(jnp.int32, (b_pad, t_mc), 1)
        valid = jnp.logical_and(col < n_mc, row_valid_b)
        xm = jnp.where(valid, x, _NEG_BIG)
        tile_max = jnp.max(xm, axis=1, keepdims=True)           # (b_pad, 1)
        new_max = jnp.maximum(run_max[...], tile_max)
        tile_sum = jnp.sum(jnp.where(valid, jnp.exp(x - new_max), 0.0),
                           axis=1, keepdims=True)
        run_sum[...] = run_sum[...] * jnp.exp(run_max[...] - new_max) + tile_sum
        run_max[...] = new_max
        tgt = mc_tgt_ref[...].astype(jnp.float32)
        dot_acc[...] += jnp.sum(tgt * x, keepdims=True)
        rowsum_acc[...] += jnp.sum(tgt, axis=1, keepdims=True)

    # ---------------- finalize: Sinkhorn on (B,1) + loss write ------------
    @pl.when(k == num_tiles - 1)
    def _finalize():
        row_valid = row_valid_b.astype(jnp.float32)
        # Defensively mask log_r0 for fully-padded rows (avoid -inf/NaN).
        log_r0 = jnp.where(
            row_valid_b,
            run_max[...] + jnp.log(jnp.maximum(run_sum[...], 1e-30)),
            0.0)

        di = dsi_ref[...]                                        # (b_pad,1) int32
        mc_cnt = jnp.sum(jnp.where(di == 1, 1.0, 0.0), keepdims=True)
        ml_cnt = jnp.sum(jnp.where(di == 0, 1.0, 0.0), keepdims=True)
        log_m = jnp.log(mc_cnt + 0.1 * ml_cnt)[0, 0]

        # iterate_P rescales each row by a scalar c_i per iteration:
        #   log r_i     = logsumexp_j sim_ij
        #   log scale_i = max(log r_i + log c_i, 0)
        #   S           = sum_i exp(min(log r_i + log c_i, 0))
        #   log c_i    += -log scale_i + log m - log S
        logc = jnp.zeros((b_pad, 1), jnp.float32)
        for _ in range(num_iters):
            cur = log_r0 + logc
            log_scale = jnp.maximum(cur, 0.0)
            s = jnp.sum(row_valid * jnp.exp(jnp.minimum(cur, 0.0)), keepdims=True)
            logc = (logc - log_scale - jnp.log(s)) + log_m

        # -sum(tgt * log P) = -(sum(tgt*sim) + sum_i rowsum(tgt)_i * log c_i)
        mc_loss = -(dot_acc[...] + jnp.sum(rowsum_acc[...] * logc, keepdims=True))
        ml_loss = -ml_acc[...]
        lane = jax.lax.broadcasted_iota(jnp.int32, (1, _LANE), 1)
        loss_ref[...] = jnp.where(lane == 0, mc_loss[0, 0],
                                  jnp.where(lane == 1, ml_loss[0, 0], 0.0))


# --------------------------------------------------------------------------
# Constant text-feature preparation (hoist to module init / call once)
# --------------------------------------------------------------------------
def prepare_text_features(ml_text, mc_text, *, max_class_tile=_MAX_CLASS_TILE):
    n_ml, d = ml_text.shape
    n_mc, d2 = mc_text.shape
    assert d == d2 and n_ml >= 1 and n_mc >= 1
    d_pad = _round_up(d, _LANE)
    t_ml = min(max_class_tile, _round_up(n_ml, _LANE))
    t_mc = min(max_class_tile, _round_up(n_mc, _LANE))
    pad_ml = _round_up(n_ml, t_ml)
    pad_mc = _round_up(n_mc, t_mc)
    # Pre-pad, pre-transpose (contract (1,)x(0,) -> no in-kernel relayout),
    # pre-cast bf16 (2x MXU / half HBM read) -- amortized over all steps.
    ml_T = jnp.pad(ml_text, ((0, pad_ml - n_ml), (0, d_pad - d))).T.astype(jnp.bfloat16)
    mc_T = jnp.pad(mc_text, ((0, pad_mc - n_mc), (0, d_pad - d))).T.astype(jnp.bfloat16)
    return dict(ml_text_T=ml_T, mc_text_T=mc_T, n_ml=n_ml, n_mc=n_mc, d=d,
                d_pad=d_pad, t_ml=t_ml, t_mc=t_mc, pad_ml=pad_ml, pad_mc=pad_mc)


# --------------------------------------------------------------------------
# Wrapper: one fused pallas_call with a class-tiled grid
# --------------------------------------------------------------------------
def classify_anything_mixed_ot_forward(
        features, multilabel_targets, multiclass_targets, dataset_indices, text,
        *, temperature=TEMPERATURE, gamma_neg=GAMMA_NEG, gamma_pos=GAMMA_POS,
        clip=CLIP, eps=EPS, num_iters=NUM_OT_ITERS):
    b, d = features.shape
    assert d == text["d"]
    n_ml, n_mc = text["n_ml"], text["n_mc"]
    t_ml, t_mc = text["t_ml"], text["t_mc"]
    pad_ml, pad_mc = text["pad_ml"], text["pad_mc"]
    d_pad = text["d_pad"]
    n_ml_tiles = pad_ml // t_ml
    n_mc_tiles = pad_mc // t_mc
    num_tiles = n_ml_tiles + n_mc_tiles
    last_ml = n_ml_tiles - 1

    b_pad = _round_up(b, _SUBLANE_BF16)

    feat = jnp.pad(features, ((0, b_pad - b), (0, d_pad - d))).astype(jnp.bfloat16)
    # Targets as bf16 (exact for the binary / one-hot targets this module uses),
    # cast back to f32 in-kernel.
    # TODO(synk): production path should ship multiclass targets as a (B,) class
    # index + validity flag (SMEM) instead of a dense slab.
    ml_tgt = jnp.pad(multilabel_targets.astype(jnp.bfloat16),
                     ((0, b_pad - b), (0, pad_ml - n_ml)))
    mc_tgt = jnp.pad(multiclass_targets.astype(jnp.bfloat16),
                     ((0, b_pad - b), (0, pad_mc - n_mc)))
    dsi = jnp.pad(dataset_indices.astype(jnp.int32).reshape(-1, 1),
                  ((0, b_pad - b), (0, 0)), constant_values=-1)

    multiclass_mask = dataset_indices == 1
    multilabel_mask = dataset_indices == 0

    kernel = functools.partial(
        _mixed_ot_kernel,
        inv_temp=1.0 / float(temperature),
        b_real=b, n_ml=n_ml, n_mc=n_mc, t_ml=t_ml, t_mc=t_mc,
        n_ml_tiles=n_ml_tiles, n_mc_tiles=n_mc_tiles,
        gamma_neg=gamma_neg, gamma_pos=gamma_pos, clip=clip, eps=eps,
        num_iters=num_iters)

    # Clamped index maps: during the "other" stream's grid steps the block index
    # is held constant, so the pipeliner skips the redundant DMA / writeback.
    ml_sim, mc_sim, losses = pl.pallas_call(
        kernel,
        grid=(num_tiles,),
        in_specs=[
            pl.BlockSpec((b_pad, d_pad), lambda k: (0, 0)),                       # features (resident)
            pl.BlockSpec((d_pad, t_ml), lambda k: (0, jnp.minimum(k, last_ml))),  # ml text^T
            pl.BlockSpec((d_pad, t_mc), lambda k: (0, jnp.maximum(k - n_ml_tiles, 0))),  # mc text^T
            pl.BlockSpec((b_pad, t_ml), lambda k: (0, jnp.minimum(k, last_ml))),  # ml targets
            pl.BlockSpec((b_pad, t_mc), lambda k: (0, jnp.maximum(k - n_ml_tiles, 0))),  # mc targets
            pl.BlockSpec((b_pad, 1), lambda k: (0, 0)),                           # dataset indices
        ],
        out_specs=[
            pl.BlockSpec((b_pad, t_ml), lambda k: (0, jnp.minimum(k, last_ml))),
            pl.BlockSpec((b_pad, t_mc), lambda k: (0, jnp.maximum(k - n_ml_tiles, 0))),
            pl.BlockSpec((1, _LANE), lambda k: (0, 0)),
        ],
        out_shape=[
            jax.ShapeDtypeStruct((b_pad, pad_ml), jnp.float32),
            jax.ShapeDtypeStruct((b_pad, pad_mc), jnp.float32),
            jax.ShapeDtypeStruct((1, _LANE), jnp.float32),   # lane0=mc, lane1=ml
        ],
        scratch_shapes=[
            pltpu.VMEM((1, 1), jnp.float32),       # ASL accumulator
            pltpu.VMEM((1, 1), jnp.float32),       # sum(tgt * sim) accumulator
            pltpu.VMEM((b_pad, 1), jnp.float32),   # per-row target rowsum
            pltpu.VMEM((b_pad, 1), jnp.float32),   # running row max
            pltpu.VMEM((b_pad, 1), jnp.float32),   # running row sumexp
        ],
        compiler_params=pltpu.CompilerParams(
            dimension_semantics=("arbitrary",),
            vmem_limit_bytes=32 * 1024 * 1024),
    )(feat, text["ml_text_T"], text["mc_text_T"], ml_tgt, mc_tgt, dsi)

    return (ml_sim[:b, :n_ml], mc_sim[:b, :n_mc],
            losses[0, 0], losses[0, 1], multilabel_mask, multiclass_mask)


# --------------------------------------------------------------------------
# Module-equivalent wrapper
# --------------------------------------------------------------------------
class ClassifyAnythingMixedOTLossPallas:
    def __init__(self, temperature=TEMPERATURE, gamma_neg=GAMMA_NEG,
                 gamma_pos=GAMMA_POS, clip=CLIP, eps=EPS,
                 max_class_tile=_MAX_CLASS_TILE):
        self.temperature = temperature
        self.gamma_neg = gamma_neg
        self.gamma_pos = gamma_pos
        self.clip = clip
        self.eps = eps
        self.max_class_tile = max_class_tile
        self._text = None

    def set_text_features(self, multilabel_text_features, multiclass_text_features):
        """Hoisted prep of the constant text features (call once at init)."""
        self._text = prepare_text_features(
            multilabel_text_features, multiclass_text_features,
            max_class_tile=self.max_class_tile)

    def __call__(self, features, multilabel_text_features, multiclass_text_features,
                 multilabel_targets, multiclass_targets, dataset_indices):
        # TODO(synk): convert_targets / dataset bookkeeping is not provided in
        # the reference; multilabel/multiclass targets are supplied pre-converted.
        text = self._text
        if (text is None
                or text["n_ml"] != multilabel_text_features.shape[0]
                or text["n_mc"] != multiclass_text_features.shape[0]):
            text = prepare_text_features(multilabel_text_features,
                                         multiclass_text_features,
                                         max_class_tile=self.max_class_tile)

        (ml_sim, mc_sim, multiclass_loss, multilabel_loss,
         multilabel_mask, multiclass_mask) = classify_anything_mixed_ot_forward(
            features, multilabel_targets, multiclass_targets, dataset_indices,
            text, temperature=self.temperature, gamma_neg=self.gamma_neg,
            gamma_pos=self.gamma_pos, clip=self.clip, eps=self.eps)

        total_loss = multiclass_loss + multilabel_loss

        # TODO(synk): dynamic-shape boolean row gather has no device-side
        # equivalent (host sync); for a pure-device pipeline return the full
        # sims + masks instead.
        _ml_sim = ml_sim[np.asarray(multilabel_mask)]
        _mc_sim = mc_sim[np.asarray(multiclass_mask)]

        return (
            {"loss": total_loss,
             "multiclass_loss": multiclass_loss,
             "multilabel_loss": multilabel_loss},
            [_ml_sim, _mc_sim, multilabel_targets, multiclass_targets],
        )


# --------------------------------------------------------------------------
# Pure numpy reference (for verification)
# --------------------------------------------------------------------------
def _ref_forward(features, ml_text, mc_text, ml_targets, mc_targets,
                 dataset_indices, temperature):
    features = np.asarray(features, np.float64)
    ml_sim = features @ np.asarray(ml_text, np.float64).T / temperature
    mc_sim = features @ np.asarray(mc_text, np.float64).T / temperature
    mc_mask = np.asarray(dataset_indices) == 1
    ml_mask = np.asarray(dataset_indices) == 0
    m = mc_mask.sum() + ml_mask.sum() * 0.1

    P = np.exp(mc_sim)
    for _ in range(NUM_OT_ITERS):
        row = P.sum(axis=1)
        scale = np.maximum(row, 1.0)
        P = P / scale[:, None]
        P = P * m / P.sum()
    mc_loss = -np.sum(np.asarray(mc_targets, np.float64) * np.log(P))

    x = ml_sim
    y = np.asarray(ml_targets, np.float64)
    anti = 1.0 - y
    xs_pos = 1.0 / (1.0 + np.exp(-x))
    xs_neg = np.minimum(1.0 - xs_pos + CLIP, 1.0)
    loss = y * np.log(np.maximum(xs_pos, EPS)) + anti * np.log(np.maximum(xs_neg, EPS))
    w = np.power(1.0 - xs_pos * y - xs_neg * anti, GAMMA_POS * y + GAMMA_NEG * anti)
    ml_loss = -np.sum(loss * w)
    return mc_loss, ml_loss


# --------------------------------------------------------------------------
if __name__ == "__main__":
    key = jax.random.PRNGKey(0)
    B, D, NUM_ML, NUM_MC = 8, 128, 16, 16
    k1, k2, k3, k4, k5 = jax.random.split(key, 5)

    features = jax.random.normal(k1, (B, D), jnp.float32)
    features = features / jnp.linalg.norm(features, axis=1, keepdims=True)
    ml_text = jax.random.normal(k2, (NUM_ML, D), jnp.float32)
    ml_text = ml_text / jnp.linalg.norm(ml_text, axis=1, keepdims=True)
    mc_text = jax.random.normal(k3, (NUM_MC, D), jnp.float32)
    mc_text = mc_text / jnp.linalg.norm(mc_text, axis=1, keepdims=True)

    dataset_indices = jnp.array([0, 1, 0, 1, 0, 1, 0, 1], jnp.int32)
    ml_mask = (dataset_indices == 0).astype(jnp.float32)[:, None]
    mc_mask = (dataset_indices == 1).astype(jnp.float32)[:, None]

    ml_targets = (jax.random.uniform(k4, (B, NUM_ML)) < 0.3).astype(jnp.float32) * ml_mask
    mc_cls = jax.random.randint(k5, (B,), 0, NUM_MC)
    mc_targets = jax.nn.one_hot(mc_cls, NUM_MC, dtype=jnp.float32) * mc_mask

    loss_module = ClassifyAnythingMixedOTLossPallas()
    loss_module.set_text_features(ml_text, mc_text)   # hoisted constant prep
    out_dict, extras = loss_module(features, ml_text, mc_text,
                                   ml_targets, mc_targets, dataset_indices)
    jax.block_until_ready(out_dict["loss"])

    # Reference uses the same bf16-rounded MXU operands as the kernel.
    feat_r = np.asarray(features.astype(jnp.bfloat16).astype(jnp.float32))
    ml_text_r = np.asarray(ml_text.astype(jnp.bfloat16).astype(jnp.float32))
    mc_text_r = np.asarray(mc_text.astype(jnp.bfloat16).astype(jnp.float32))
    ref_mc, ref_ml = _ref_forward(feat_r, ml_text_r, mc_text_r,
                                  ml_targets, mc_targets, dataset_indices, TEMPERATURE)
    np.testing.assert_allclose(float(out_dict["multiclass_loss"]), ref_mc,
                               rtol=2e-2, atol=2e-2)
    np.testing.assert_allclose(float(out_dict["multilabel_loss"]), ref_ml,
                               rtol=2e-2, atol=2e-2)
    assert np.isfinite(float(out_dict["loss"]))
    assert extras[0].shape == (4, NUM_ML) and extras[1].shape == (4, NUM_MC)

    print("KERNEL_OK")
</pallas_src>

<mosaic_0001>
module attributes {stable_mosaic.version = 11 : i64} {
  func.func @_mixed_ot_kernel(%arg0: i32, %arg1: memref<16x128xbf16, #tpu.memory_space<vmem>>, %arg2: memref<128x128xbf16, #tpu.memory_space<vmem>>, %arg3: memref<128x128xbf16, #tpu.memory_space<vmem>>, %arg4: memref<16x128xbf16, #tpu.memory_space<vmem>>, %arg5: memref<16x128xbf16, #tpu.memory_space<vmem>>, %arg6: memref<16x1xi32, #tpu.memory_space<vmem>>, %arg7: memref<16x128xf32, #tpu.memory_space<vmem>>, %arg8: memref<16x128xf32, #tpu.memory_space<vmem>>, %arg9: memref<1x128xf32, #tpu.memory_space<vmem>>, %arg10: memref<1x1xf32, #tpu.memory_space<vmem>>, %arg11: memref<1x1xf32, #tpu.memory_space<vmem>>, %arg12: memref<16x1xf32, #tpu.memory_space<vmem>>, %arg13: memref<16x1xf32, #tpu.memory_space<vmem>>, %arg14: memref<16x1xf32, #tpu.memory_space<vmem>>) attributes {dimension_semantics = [#tpu.dimension_semantics<arbitrary>], iteration_bounds = array<i64: 2>, scalar_prefetch = 0 : i64, scratch_operands = 5 : i64, tpu.core_type = #tpu.core_type<tc>, window_params = [{pipeline_mode = #tpu.pipeline_mode<synchronous>, transform_indices = @transform_0, window_bounds = array<i64: 16, 128>}, {transform_indices = @transform_1, window_bounds = array<i64: 128, 128>}, {transform_indices = @transform_2, window_bounds = array<i64: 128, 128>}, {transform_indices = @transform_3, window_bounds = array<i64: 16, 128>}, {transform_indices = @transform_4, window_bounds = array<i64: 16, 128>}, {pipeline_mode = #tpu.pipeline_mode<synchronous>, transform_indices = @transform_5, window_bounds = array<i64: 16, 1>}, {transform_indices = @transform_6, window_bounds = array<i64: 16, 128>}, {transform_indices = @transform_7, window_bounds = array<i64: 16, 128>}, {pipeline_mode = #tpu.pipeline_mode<synchronous>, transform_indices = @transform_8, window_bounds = array<i64: 1, 128>}]} {
    %c0_i32 = arith.constant 0 : i32
    %0 = arith.cmpi eq, %arg0, %c0_i32 : i32
    %1 = arith.extui %0 : i1 to i32
    %c0_i32_0 = arith.constant 0 : i32
    %2 = arith.cmpi ne, %1, %c0_i32_0 : i32
    scf.if %2 {
      %cst = arith.constant 0.000000e+00 : f32
      %16 = vector.broadcast %cst : f32 to vector<1x1xf32>
      %c0_7 = arith.constant 0 : index
      %c0_8 = arith.constant 0 : index
      %17 = vector.load %arg10[%c0_7, %c0_8] : memref<1x1xf32, #tpu.memory_space<vmem>>, vector<1x1xf32>
      tpu.vector_store %arg10[%c0_7, %c0_8], %16 {strides = array<i32>} : memref<1x1xf32, #tpu.memory_space<vmem>>, vector<1x1xf32>,
      %cst_9 = arith.constant 0.000000e+00 : f32
      %18 = vector.broadcast %cst_9 : f32 to vector<1x1xf32>
      %c0_10 = arith.constant 0 : index
      %c0_11 = arith.constant 0 : index
      %19 = vector.load %arg11[%c0_10, %c0_11] : memref<1x1xf32, #tpu.memory_space<vmem>>, vector<1x1xf32>
      tpu.vector_store %arg11[%c0_10, %c0_11], %18 {strides = array<i32>} : memref<1x1xf32, #tpu.memory_space<vmem>>, vector<1x1xf32>,
      %cst_12 = arith.constant 0.000000e+00 : f32
      %20 = vector.broadcast %cst_12 : f32 to vector<16x1xf32>
      %c0_13 = arith.constant 0 : index
      %c0_14 = arith.constant 0 : index
      %21 = vector.load %arg12[%c0_13, %c0_14] : memref<16x1xf32, #tpu.memory_space<vmem>>, vector<16x1xf32>
      tpu.vector_store %arg12[%c0_13, %c0_14], %20 {strides = array<i32>} : memref<16x1xf32, #tpu.memory_space<vmem>>, vector<16x1xf32>,
      %cst_15 = arith.constant -1.000000e+30 : f32
      %22 = vector.broadcast %cst_15 : f32 to vector<16x1xf32>
      %c0_16 = arith.constant 0 : index
      %c0_17 = arith.constant 0 : index
      %23 = vector.load %arg13[%c0_16, %c0_17] : memref<16x1xf32, #tpu.memory_space<vmem>>, vector<16x1xf32>
      tpu.vector_store %arg13[%c0_16, %c0_17], %22 {strides = array<i32>} : memref<16x1xf32, #tpu.memory_space<vmem>>, vector<16x1xf32>,
      %cst_18 = arith.constant 0.000000e+00 : f32
      %24 = vector.broadcast %cst_18 : f32 to vector<16x1xf32>
      %c0_19 = arith.constant 0 : index
      %c0_20 = arith.constant 0 : index
      %25 = vector.load %arg14[%c0_19, %c0_20] : memref<16x1xf32, #tpu.memory_space<vmem>>, vector<16x1xf32>
      tpu.vector_store %arg14[%c0_19, %c0_20], %24 {strides = array<i32>} : memref<16x1xf32, #tpu.memory_space<vmem>>, vector<16x1xf32>,
    } else {
    }
    %c0 = arith.constant 0 : index
    %c0_1 = arith.constant 0 : index
    %3 = vector.load %arg1[%c0, %c0_1] : memref<16x128xbf16, #tpu.memory_space<vmem>>, vector<16x128xbf16>
    %4 = tpu.iota {dimensions = array<i32: 0>} : vector<16x1xi32>
    %c8_i32 = arith.constant 8 : i32
    %5 = vector.broadcast %c8_i32 : i32 to vector<16x1xi32>
    %6 = arith.cmpi slt, %4, %5 : vector<16x1xi32>
    %c1_i32 = arith.constant 1 : i32
    %7 = arith.cmpi slt, %arg0, %c1_i32 : i32
    %8 = arith.extui %7 : i1 to i32
    %c0_i32_2 = arith.constant 0 : i32
    %9 = arith.cmpi ne, %8, %c0_i32_2 : i32
    scf.if %9 {
      %c0_7 = arith.constant 0 : index
      %c0_8 = arith.constant 0 : index
      %16 = vector.load %arg2[%c0_7, %c0_8] : memref<128x128xbf16, #tpu.memory_space<vmem>>, vector<128x128xbf16>
      %cst = arith.constant dense<0.000000e+00> : vector<16x128xf32>
      %17 = tpu.matmul %3, %16, %cst {dimension_numbers = #tpu.dot_dimension_numbers<[1], [0], [0], [1], [0, 0, 1, 1], [], []>} : vector<16x128xbf16>, vector<128x128xbf16>, vector<16x128xf32> -> vector<16x128xf32>
      %cst_9 = arith.constant 2.000000e+00 : f32
      %18 = vector.broadcast %cst_9 : f32 to vector<16x128xf32>
      %19 = arith.mulf %17, %18 : vector<16x128xf32>
      %c0_10 = arith.constant 0 : index
      %c0_11 = arith.constant 0 : index
      %20 = vector.load %arg7[%c0_10, %c0_11] : memref<16x128xf32, #tpu.memory_space<vmem>>, vector<16x128xf32>
      tpu.vector_store %arg7[%c0_10, %c0_11], %19 {strides = array<i32>} : memref<16x128xf32, #tpu.memory_space<vmem>>, vector<16x128xf32>,
      %c128_i32 = arith.constant 128 : i32
      %21 = arith.muli %arg0, %c128_i32 : i32
      %22 = tpu.iota {dimensions = array<i32: 1>} : vector<16x128xi32>
      %23 = vector.broadcast %21 : i32 to vector<16x128xi32>
      %24 = arith.addi %23, %22 : vector<16x128xi32>
      %c16_i32 = arith.constant 16 : i32
      %25 = vector.broadcast %c16_i32 : i32 to vector<16x128xi32>
      %26 = arith.cmpi slt, %24, %25 : vector<16x128xi32>
      %27 = vector.broadcast %6 : vector<16x1xi1> to vector<16x128xi1>
      %28 = arith.andi %26, %27 : vector<16x128xi1>
      %c0_12 = arith.constant 0 : index
      %c0_13 = arith.constant 0 : index
      %29 = vector.load %arg4[%c0_12, %c0_13] : memref<16x128xbf16, #tpu.memory_space<vmem>>, vector<16x128xbf16>
      %30 = arith.extf %29 : vector<16x128xbf16> to vector<16x128xf32>
      %cst_14 = arith.constant 0.000000e+00 : f32
      %31 = vector.broadcast %cst_14 : f32 to vector<16x128xf32>
      %32 = arith.subf %31, %19 : vector<16x128xf32>
      %33 = math.exp %32 : vector<16x128xf32>
      %cst_15 = arith.constant 1.000000e+00 : f32
      %34 = vector.broadcast %cst_15 : f32 to vector<16x128xf32>
      %35 = arith.addf %34, %33 : vector<16x128xf32>
      %36 = tpu.reciprocal %35 {approx = true} : vector<16x128xf32> -> vector<16x128xf32>
      %cst_16 = arith.constant 1.000000e+00 : f32
      %37 = vector.broadcast %cst_16 : f32 to vector<16x128xf32>
      %38 = arith.subf %37, %36 : vector<16x128xf32>
      %cst_17 = arith.constant 5.000000e-02 : f32
      %39 = vector.broadcast %cst_17 : f32 to vector<16x128xf32>
      %40 = arith.addf %38, %39 : vector<16x128xf32>
      %cst_18 = arith.constant 1.000000e+00 : f32
      %41 = vector.broadcast %cst_18 : f32 to vector<16x128xf32>
      %42 = arith.minimumf %40, %41 : vector<16x128xf32>
      %cst_19 = arith.constant 5.000000e-01 : f32
      %43 = vector.broadcast %cst_19 : f32 to vector<16x128xf32>
      %44 = arith.cmpf ogt, %30, %43 : vector<16x128xf32>
      %45 = arith.select %44, %36, %42 : vector<16x128xi1>, vector<16x128xf32>
      %cst_20 = arith.constant 9.99999993E-9 : f32
      %46 = vector.broadcast %cst_20 : f32 to vector<16x128xf32>
      %47 = arith.maximumf %45, %46 : vector<16x128xf32>
      %48 = math.log %47 : vector<16x128xf32>
      %49 = arith.mulf %36, %30 : vector<16x128xf32>
      %cst_21 = arith.constant 1.000000e+00 : f32
      %50 = vector.broadcast %cst_21 : f32 to vector<16x128xf32>
      %51 = arith.subf %50, %49 : vector<16x128xf32>
      %cst_22 = arith.constant 1.000000e+00 : f32
      %52 = vector.broadcast %cst_22 : f32 to vector<16x128xf32>
      %53 = arith.subf %52, %30 : vector<16x128xf32>
      %54 = arith.mulf %42, %53 : vector<16x128xf32>
      %55 = arith.subf %51, %54 : vector<16x128xf32>
      %56 = arith.mulf %55, %55 : vector<16x128xf32>
      %57 = arith.mulf %56, %56 : vector<16x128xf32>
      %58 = arith.select %44, %55, %57 : vector<16x128xi1>, vector<16x128xf32>
      %59 = arith.mulf %48, %58 : vector<16x128xf32>
      %cst_23 = arith.constant 0.000000e+00 : f32
      %60 = vector.broadcast %cst_23 : f32 to vector<16x128xf32>
      %61 = arith.select %28, %59, %60 : vector<16x128xi1>, vector<16x128xf32>
      %c0_24 = arith.constant 0 : index
      %c0_25 = arith.constant 0 : index
      %62 = vector.load %arg10[%c0_24, %c0_25] : memref<1x1xf32, #tpu.memory_space<vmem>>, vector<1x1xf32>
      %63 = vector.shape_cast %61 : vector<16x128xf32> to vector<1x16x128xf32>
      %cst_26 = arith.constant dense<0.000000e+00> : vector<1xf32>
      %64 = vector.multi_reduction <add>, %63, %cst_26 [1, 2] : vector<1x16x128xf32> to vector<1xf32>
      %65 = vector.shape_cast %64 : vector<1xf32> to vector<1x1x1xf32>
      %66 = vector.extract %65[0, 0, 0] : f32 from vector<1x1x1xf32>
      %67 = vector.broadcast %66 : f32 to vector<1x1xf32>
      %68 = arith.addf %62, %67 : vector<1x1xf32>
      %c0_27 = arith.constant 0 : index
      %c0_28 = arith.constant 0 : index
      %69 = vector.load %arg10[%c0_27, %c0_28] : memref<1x1xf32, #tpu.memory_space<vmem>>, vector<1x1xf32>
      tpu.vector_store %arg10[%c0_27, %c0_28], %68 {strides = array<i32>} : memref<1x1xf32, #tpu.memory_space<vmem>>, vector<1x1xf32>,
    } else {
    }
    %c1_i32_3 = arith.constant 1 : i32
    %10 = arith.cmpi sge, %arg0, %c1_i32_3 : i32
    %11 = arith.extui %10 : i1 to i32
    %c0_i32_4 = arith.constant 0 : i32
    %12 = arith.cmpi ne, %11, %c0_i32_4 : i32
    scf.if %12 {
      %c1_i32_7 = arith.constant 1 : i32
      %16 = arith.subi %arg0, %c1_i32_7 : i32
      %c0_8 = arith.constant 0 : index
      %c0_9 = arith.constant 0 : index
      %17 = vector.load %arg3[%c0_8, %c0_9] : memref<128x128xbf16, #tpu.memory_space<vmem>>, vector<128x128xbf16>
      %cst = arith.constant dense<0.000000e+00> : vector<16x128xf32>
      %18 = tpu.matmul %3, %17, %cst {dimension_numbers = #tpu.dot_dimension_numbers<[1], [0], [0], [1], [0, 0, 1, 1], [], []>} : vector<16x128xbf16>, vector<128x128xbf16>, vector<16x128xf32> -> vector<16x128xf32>
      %cst_10 = arith.constant 2.000000e+00 : f32
      %19 = vector.broadcast %cst_10 : f32 to vector<16x128xf32>
      %20 = arith.mulf %18, %19 : vector<16x128xf32>
      %c0_11 = arith.constant 0 : index
      %c0_12 = arith.constant 0 : index
      %21 = vector.load %arg8[%c0_11, %c0_12] : memref<16x128xf32, #tpu.memory_space<vmem>>, vector<16x128xf32>
      tpu.vector_store %arg8[%c0_11, %c0_12], %20 {strides = array<i32>} : memref<16x128xf32, #tpu.memory_space<vmem>>, vector<16x128xf32>,
      %c128_i32 = arith.constant 128 : i32
      %22 = arith.muli %16, %c128_i32 : i32
      %23 = tpu.iota {dimensions = array<i32: 1>} : vector<16x128xi32>
      %24 = vector.broadcast %22 : i32 to vector<16x128xi32>
      %25 = arith.addi %24, %23 : vector<16x128xi32>
      %c16_i32 = arith.constant 16 : i32
      %26 = vector.broadcast %c16_i32 : i32 to vector<16x128xi32>
      %27 = arith.cmpi slt, %25, %26 : vector<16x128xi32>
      %28 = vector.broadcast %6 : vector<16x1xi1> to vector<16x128xi1>
      %29 = arith.andi %27, %28 : vector<16x128xi1>
      %cst_13 = arith.constant -1.000000e+30 : f32
      %30 = vector.broadcast %cst_13 : f32 to vector<16x128xf32>
      %31 = arith.select %29, %20, %30 : vector<16x128xi1>, vector<16x128xf32>
      %cst_14 = arith.constant dense<0xFF800000> : vector<16xf32>
      %32 = vector.multi_reduction <maximumf>, %31, %cst_14 [1] : vector<16x128xf32> to vector<16xf32>
      %33 = vector.shape_cast %32 : vector<16xf32> to vector<16x1xf32>
      %c0_15 = arith.constant 0 : index
      %c0_16 = arith.constant 0 : index
      %34 = vector.load %arg13[%c0_15, %c0_16] : memref<16x1xf32, #tpu.memory_space<vmem>>, vector<16x1xf32>
      %35 = arith.maximumf %34, %33 : vector<16x1xf32>
      %36 = vector.broadcast %35 : vector<16x1xf32> to vector<16x128xf32>
      %37 = arith.subf %20, %36 : vector<16x128xf32>
      %38 = math.exp %37 : vector<16x128xf32>
      %cst_17 = arith.constant 0.000000e+00 : f32
      %39 = vector.broadcast %cst_17 : f32 to vector<16x128xf32>
      %40 = arith.select %29, %38, %39 : vector<16x128xi1>, vector<16x128xf32>
      %cst_18 = arith.constant dense<0.000000e+00> : vector<16xf32>
      %41 = vector.multi_reduction <add>, %40, %cst_18 [1] : vector<16x128xf32> to vector<16xf32>
      %42 = vector.shape_cast %41 : vector<16xf32> to vector<16x1xf32>
      %c0_19 = arith.constant 0 : index
      %c0_20 = arith.constant 0 : index
      %43 = vector.load %arg14[%c0_19, %c0_20] : memref<16x1xf32, #tpu.memory_space<vmem>>, vector<16x1xf32>
      %c0_21 = arith.constant 0 : index
      %c0_22 = arith.constant 0 : index
      %44 = vector.load %arg13[%c0_21, %c0_22] : memref<16x1xf32, #tpu.memory_space<vmem>>, vector<16x1xf32>
      %45 = arith.subf %44, %35 : vector<16x1xf32>
      %46 = math.exp %45 : vector<16x1xf32>
      %47 = arith.mulf %43, %46 : vector<16x1xf32>
      %48 = arith.addf %47, %42 : vector<16x1xf32>
      %c0_23 = arith.constant 0 : index
      %c0_24 = arith.constant 0 : index
      %49 = vector.load %arg14[%c0_23, %c0_24] : memref<16x1xf32, #tpu.memory_space<vmem>>, vector<16x1xf32>
      tpu.vector_store %arg14[%c0_23, %c0_24], %48 {strides = array<i32>} : memref<16x1xf32, #tpu.memory_space<vmem>>, vector<16x1xf32>,
      %c0_25 = arith.constant 0 : index
      %c0_26 = arith.constant 0 : index
      %50 = vector.load %arg13[%c0_25, %c0_26] : memref<16x1xf32, #tpu.memory_space<vmem>>, vector<16x1xf32>
      tpu.vector_store %arg13[%c0_25, %c0_26], %35 {strides = array<i32>} : memref<16x1xf32, #tpu.memory_space<vmem>>, vector<16x1xf32>,
      %c0_27 = arith.constant 0 : index
      %c0_28 = arith.constant 0 : index
      %51 = vector.load %arg5[%c0_27, %c0_28] : memref<16x128xbf16, #tpu.memory_space<vmem>>, vector<16x128xbf16>
      %52 = arith.extf %51 : vector<16x128xbf16> to vector<16x128xf32>
      %c0_29 = arith.constant 0 : index
      %c0_30 = arith.constant 0 : index
      %53 = vector.load %arg11[%c0_29, %c0_30] : memref<1x1xf32, #tpu.memory_space<vmem>>, vector<1x1xf32>
      %54 = arith.mulf %52, %20 : vector<16x128xf32>
      %55 = vector.shape_cast %54 : vector<16x128xf32> to vector<1x16x128xf32>
      %cst_31 = arith.constant dense<0.000000e+00> : vector<1xf32>
      %56 = vector.multi_reduction <add>, %55, %cst_31 [1, 2] : vector<1x16x128xf32> to vector<1xf32>
      %57 = vector.shape_cast %56 : vector<1xf32> to vector<1x1x1xf32>
      %58 = vector.extract %57[0, 0, 0] : f32 from vector<1x1x1xf32>
      %59 = vector.broadcast %58 : f32 to vector<1x1xf32>
      %60 = arith.addf %53, %59 : vector<1x1xf32>
      %c0_32 = arith.constant 0 : index
      %c0_33 = arith.constant 0 : index
      %61 = vector.load %arg11[%c0_32, %c0_33] : memref<1x1xf32, #tpu.memory_space<vmem>>, vector<1x1xf32>
      tpu.vector_store %arg11[%c0_32, %c0_33], %60 {strides = array<i32>} : memref<1x1xf32, #tpu.memory_space<vmem>>, vector<1x1xf32>,
      %c0_34 = arith.constant 0 : index
      %c0_35 = arith.constant 0 : index
      %62 = vector.load %arg12[%c0_34, %c0_35] : memref<16x1xf32, #tpu.memory_space<vmem>>, vector<16x1xf32>
      %cst_36 = arith.constant dense<0.000000e+00> : vector<16xf32>
      %63 = vector.multi_reduction <add>, %52, %cst_36 [1] : vector<16x128xf32> to vector<16xf32>
      %64 = vector.shape_cast %63 : vector<16xf32> to vector<16x1xf32>
      %65 = arith.addf %62, %64 : vector<16x1xf32>
      %c0_37 = arith.constant 0 : index
      %c0_38 = arith.constant 0 : index
      %66 = vector.load %arg12[%c0_37, %c0_38] : memref<16x1xf32, #tpu.memory_space<vmem>>, vector<16x1xf32>
      tpu.vector_store %arg12[%c0_37, %c0_38], %65 {strides = array<i32>} : memref<16x1xf32, #tpu.memory_space<vmem>>, vector<16x1xf32>,
    } else {
    }
    %c1_i32_5 = arith.constant 1 : i32
    %13 = arith.cmpi eq, %arg0, %c1_i32_5 : i32
    %14 = arith.extui %13 : i1 to i32
    %c0_i32_6 = arith.constant 0 : i32
    %15 = arith.cmpi ne, %14, %c0_i32_6 : i32
    scf.if %15 {
      %16 = arith.extui %6 : vector<16x1xi1> to vector<16x1xi32>
      %17 = arith.sitofp %16 : vector<16x1xi32> to vector<16x1xf32>
      %c0_7 = arith.constant 0 : index
      %c0_8 = arith.constant 0 : index
      %18 = vector.load %arg13[%c0_7, %c0_8] : memref<16x1xf32, #tpu.memory_space<vmem>>, vector<16x1xf32>
      %c0_9 = arith.constant 0 : index
      %c0_10 = arith.constant 0 : index
      %19 = vector.load %arg14[%c0_9, %c0_10] : memref<16x1xf32, #tpu.memory_space<vmem>>, vector<16x1xf32>
      %cst = arith.constant 1.000000e-30 : f32
      %20 = vector.broadcast %cst : f32 to vector<16x1xf32>
      %21 = arith.maximumf %19, %20 : vector<16x1xf32>
      %22 = math.log %21 : vector<16x1xf32>
      %23 = arith.addf %18, %22 : vector<16x1xf32>
      %cst_11 = arith.constant 0.000000e+00 : f32
      %24 = vector.broadcast %cst_11 : f32 to vector<16x1xf32>
      %25 = arith.select %6, %23, %24 : vector<16x1xi1>, vector<16x1xf32>
      %c0_12 = arith.constant 0 : index
      %c0_13 = arith.constant 0 : index
      %26 = vector.load %arg6[%c0_12, %c0_13] : memref<16x1xi32, #tpu.memory_space<vmem>>, vector<16x1xi32>
      %c1_i32_14 = arith.constant 1 : i32
      %27 = vector.broadcast %c1_i32_14 : i32 to vector<16x1xi32>
      %28 = arith.cmpi eq, %26, %27 : vector<16x1xi32>
      %cst_15 = arith.constant 1.000000e+00 : f32
      %cst_16 = arith.constant 0.000000e+00 : f32
      %29 = vector.broadcast %cst_15 : f32 to vector<16x1xf32>
      %30 = vector.broadcast %cst_16 : f32 to vector<16x1xf32>
      %31 = arith.select %28, %29, %30 : vector<16x1xi1>, vector<16x1xf32>
      %32 = vector.shape_cast %31 : vector<16x1xf32> to vector<1x16x1xf32>
      %cst_17 = arith.constant dense<0.000000e+00> : vector<1xf32>
      %33 = vector.multi_reduction <add>, %32, %cst_17 [1, 2] : vector<1x16x1xf32> to vector<1xf32>
      %34 = vector.shape_cast %33 : vector<1xf32> to vector<1x1x1xf32>
      %35 = vector.extract %34[0, 0, 0] : f32 from vector<1x1x1xf32>
      %36 = vector.broadcast %35 : f32 to vector<1x1xf32>
      %c0_i32_18 = arith.constant 0 : i32
      %37 = vector.broadcast %c0_i32_18 : i32 to vector<16x1xi32>
      %38 = arith.cmpi eq, %26, %37 : vector<16x1xi32>
      %cst_19 = arith.constant 1.000000e+00 : f32
      %cst_20 = arith.constant 0.000000e+00 : f32
      %39 = vector.broadcast %cst_19 : f32 to vector<16x1xf32>
      %40 = vector.broadcast %cst_20 : f32 to vector<16x1xf32>
      %41 = arith.select %38, %39, %40 : vector<16x1xi1>, vector<16x1xf32>
      %42 = vector.shape_cast %41 : vector<16x1xf32> to vector<1x16x1xf32>
      %cst_21 = arith.constant dense<0.000000e+00> : vector<1xf32>
      %43 = vector.multi_reduction <add>, %42, %cst_21 [1, 2] : vector<1x16x1xf32> to vector<1xf32>
      %44 = vector.shape_cast %43 : vector<1xf32> to vector<1x1x1xf32>
      %45 = vector.extract %44[0, 0, 0] : f32 from vector<1x1x1xf32>
      %46 = vector.broadcast %45 : f32 to vector<1x1xf32>
      %cst_22 = arith.constant 1.000000e-01 : f32
      %47 = vector.broadcast %cst_22 : f32 to vector<1x1xf32>
      %48 = arith.mulf %47, %46 : vector<1x1xf32>
      %49 = arith.addf %36, %48 : vector<1x1xf32>
      %50 = math.log %49 : vector<1x1xf32>
      %51 = vector.extract %50[0, 0] : f32 from vector<1x1xf32>
      %cst_23 = arith.constant 0.000000e+00 : f32
      %52 = vector.broadcast %cst_23 : f32 to vector<16x1xf32>
      %53 = arith.addf %25, %52 : vector<16x1xf32>
      %cst_24 = arith.constant 0.000000e+00 : f32
      %54 = vector.broadcast %cst_24 : f32 to vector<16x1xf32>
      %55 = arith.maximumf %53, %54 : vector<16x1xf32>
      %cst_25 = arith.constant 0.000000e+00 : f32
      %56 = vector.broadcast %cst_25 : f32 to vector<16x1xf32>
      %57 = arith.minimumf %53, %56 : vector<16x1xf32>
      %58 = math.exp %57 : vector<16x1xf32>
      %59 = arith.mulf %17, %58 : vector<16x1xf32>
      %60 = vector.shape_cast %59 : vector<16x1xf32> to vector<1x16x1xf32>
      %cst_26 = arith.constant dense<0.000000e+00> : vector<1xf32>
      %61 = vector.multi_reduction <add>, %60, %cst_26 [1, 2] : vector<1x16x1xf32> to vector<1xf32>
      %62 = vector.shape_cast %61 : vector<1xf32> to vector<1x1x1xf32>
      %63 = vector.extract %62[0, 0, 0] : f32 from vector<1x1x1xf32>
      %64 = vector.broadcast %63 : f32 to vector<1x1xf32>
      %65 = arith.subf %52, %55 : vector<16x1xf32>
      %66 = math.log %64 : vector<1x1xf32>
      %67 = vector.broadcast %66 : vector<1x1xf32> to vector<16x1xf32>
      %68 = arith.subf %65, %67 : vector<16x1xf32>
      %69 = vector.broadcast %51 : f32 to vector<16x1xf32>
      %70 = arith.addf %68, %69 : vector<16x1xf32>
      %71 = arith.addf %25, %70 : vector<16x1xf32>
      %cst_27 = arith.constant 0.000000e+00 : f32
      %72 = vector.broadcast %cst_27 : f32 to vector<16x1xf32>
      %73 = arith.maximumf %71, %72 : vector<16x1xf32>
      %cst_28 = arith.constant 0.000000e+00 : f32
      %74 = vector.broadcast %cst_28 : f32 to vector<16x1xf32>
      %75 = arith.minimumf %71, %74 : vector<16x1xf32>
      %76 = math.exp %75 : vector<16x1xf32>
      %77 = arith.mulf %17, %76 : vector<16x1xf32>
      %78 = vector.shape_cast %77 : vector<16x1xf32> to vector<1x16x1xf32>
      %cst_29 = arith.constant dense<0.000000e+00> : vector<1xf32>
      %79 = vector.multi_reduction <add>, %78, %cst_29 [1, 2] : vector<1x16x1xf32> to vector<1xf32>
      %80 = vector.shape_cast %79 : vector<1xf32> to vector<1x1x1xf32>
      %81 = vector.extract %80[0, 0, 0] : f32 from vector<1x1x1xf32>
      %82 = vector.broadcast %81 : f32 to vector<1x1xf32>
      %83 = arith.subf %70, %73 : vector<16x1xf32>
      %84 = math.log %82 : vector<1x1xf32>
      %85 = vector.broadcast %84 : vector<1x1xf32> to vector<16x1xf32>
      %86 = arith.subf %83, %85 : vector<16x1xf32>
      %87 = vector.broadcast %51 : f32 to vector<16x1xf32>
      %88 = arith.addf %86, %87 : vector<16x1xf32>
      %89 = arith.addf %25, %88 : vector<16x1xf32>
      %cst_30 = arith.constant 0.000000e+00 : f32
      %90 = vector.broadcast %cst_30 : f32 to vector<16x1xf32>
      %91 = arith.maximumf %89, %90 : vector<16x1xf32>
      %cst_31 = arith.constant 0.000000e+00 : f32
      %92 = vector.broadcast %cst_31 : f32 to vector<16x1xf32>
      %93 = arith.minimumf %89, %92 : vector<16x1xf32>
      %94 = math.exp %93 : vector<16x1xf32>
      %95 = arith.mulf %17, %94 : vector<16x1xf32>
      %96 = vector.shape_cast %95 : vector<16x1xf32> to vector<1x16x1xf32>
      %cst_32 = arith.constant dense<0.000000e+00> : vector<1xf32>
      %97 = vector.multi_reduction <add>, %96, %cst_32 [1, 2] : vector<1x16x1xf32> to vector<1xf32>
      %98 = vector.shape_cast %97 : vector<1xf32> to vector<1x1x1xf32>
      %99 = vector.extract %98[0, 0, 0] : f32 from vector<1x1x1xf32>
      %100 = vector.broadcast %99 : f32 to vector<1x1xf32>
      %101 = arith.subf %88, %91 : vector<16x1xf32>
      %102 = math.log %100 : vector<1x1xf32>
      %103 = vector.broadcast %102 : vector<1x1xf32> to vector<16x1xf32>
      %104 = arith.subf %101, %103 : vector<16x1xf32>
      %105 = vector.broadcast %51 : f32 to vector<16x1xf32>
      %106 = arith.addf %104, %105 : vector<16x1xf32>
      %107 = arith.addf %25, %106 : vector<16x1xf32>
      %cst_33 = arith.constant 0.000000e+00 : f32
      %108 = vector.broadcast %cst_33 : f32 to vector<16x1xf32>
      %109 = arith.maximumf %107, %108 : vector<16x1xf32>
      %cst_34 = arith.constant 0.000000e+00 : f32
      %110 = vector.broadcast %cst_34 : f32 to vector<16x1xf32>
      %111 = arith.minimumf %107, %110 : vector<16x1xf32>
      %112 = math.exp %111 : vector<16x1xf32>
      %113 = arith.mulf %17, %112 : vector<16x1xf32>
      %114 = vector.shape_cast %113 : vector<16x1xf32> to vector<1x16x1xf32>
      %cst_35 = arith.constant dense<0.000000e+00> : vector<1xf32>
      %115 = vector.multi_reduction <add>, %114, %cst_35 [1, 2] : vector<1x16x1xf32> to vector<1xf32>
      %116 = vector.shape_cast %115 : vector<1xf32> to vector<1x1x1xf32>
      %117 = vector.extract %116[0, 0, 0] : f32 from vector<1x1x1xf32>
      %118 = vector.broadcast %117 : f32 to vector<1x1xf32>
      %119 = arith.subf %106, %109 : vector<16x1xf32>
      %120 = math.log %118 : vector<1x1xf32>
      %121 = vector.broadcast %120 : vector<1x1xf32> to vector<16x1xf32>
      %122 = arith.subf %119, %121 : vector<16x1xf32>
      %123 = vector.broadcast %51 : f32 to vector<16x1xf32>
      %124 = arith.addf %122, %123 : vector<16x1xf32>
      %125 = arith.addf %25, %124 : vector<16x1xf32>
      %cst_36 = arith.constant 0.000000e+00 : f32
      %126 = vector.broadcast %cst_36 : f32 to vector<16x1xf32>
      %127 = arith.maximumf %125, %126 : vector<16x1xf32>
      %cst_37 = arith.constant 0.000000e+00 : f32
      %128 = vector.broadcast %cst_37 : f32 to vector<16x1xf32>
      %129 = arith.minimumf %125, %128 : vector<16x1xf32>
      %130 = math.exp %129 : vector<16x1xf32>
      %131 = arith.mulf %17, %130 : vector<16x1xf32>
      %132 = vector.shape_cast %131 : vector<16x1xf32> to vector<1x16x1xf32>
      %cst_38 = arith.constant dense<0.000000e+00> : vector<1xf32>
      %133 = vector.multi_reduction <add>, %132, %cst_38 [1, 2] : vector<1x16x1xf32> to vector<1xf32>
      %134 = vector.shape_cast %133 : vector<1xf32> to vector<1x1x1xf32>
      %135 = vector.extract %134[0, 0, 0] : f32 from vector<1x1x1xf32>
      %136 = vector.broadcast %135 : f32 to vector<1x1xf32>
      %137 = arith.subf %124, %127 : vector<16x1xf32>
      %138 = math.log %136 : vector<1x1xf32>
      %139 = vector.broadcast %138 : vector<1x1xf32> to vector<16x1xf32>
      %140 = arith.subf %137, %139 : vector<16x1xf32>
      %141 = vector.broadcast %51 : f32 to vector<16x1xf32>
      %142 = arith.addf %140, %141 : vector<16x1xf32>
      %c0_39 = arith.constant 0 : index
      %c0_40 = arith.constant 0 : index
      %143 = vector.load %arg11[%c0_39, %c0_40] : memref<1x1xf32, #tpu.memory_space<vmem>>, vector<1x1xf32>
      %c0_41 = arith.constant 0 : index
      %c0_42 = arith.constant 0 : index
      %144 = vector.load %arg12[%c0_41, %c0_42] : memref<16x1xf32, #tpu.memory_space<vmem>>, vector<16x1xf32>
      %145 = arith.mulf %144, %142 : vector<16x1xf32>
      %146 = vector.shape_cast %145 : vector<16x1xf32> to vector<1x16x1xf32>
      %cst_43 = arith.constant dense<0.000000e+00> : vector<1xf32>
      %147 = vector.multi_reduction <add>, %146, %cst_43 [1, 2] : vector<1x16x1xf32> to vector<1xf32>
      %148 = vector.shape_cast %147 : vector<1xf32> to vector<1x1x1xf32>
      %149 = vector.extract %148[0, 0, 0] : f32 from vector<1x1x1xf32>
      %150 = vector.broadcast %149 : f32 to vector<1x1xf32>
      %151 = arith.addf %143, %150 : vector<1x1xf32>
      %cst_44 = arith.constant 0.000000e+00 : f32
      %152 = vector.broadcast %cst_44 : f32 to vector<1x1xf32>
      %153 = arith.subf %152, %151 : vector<1x1xf32>
      %c0_45 = arith.constant 0 : index
      %c0_46 = arith.constant 0 : index
      %154 = vector.load %arg10[%c0_45, %c0_46] : memref<1x1xf32, #tpu.memory_space<vmem>>, vector<1x1xf32>
      %cst_47 = arith.constant 0.000000e+00 : f32
      %155 = vector.broadcast %cst_47 : f32 to vector<1x1xf32>
      %156 = arith.subf %155, %154 : vector<1x1xf32>
      %157 = tpu.iota {dimensions = array<i32: 1>} : vector<1x128xi32>
      %c0_i32_48 = arith.constant 0 : i32
      %158 = vector.broadcast %c0_i32_48 : i32 to vector<1x128xi32>
      %159 = arith.cmpi eq, %157, %158 : vector<1x128xi32>
      %160 = vector.extract %153[0, 0] : f32 from vector<1x1xf32>
      %c1_i32_49 = arith.constant 1 : i32
      %161 = vector.broadcast %c1_i32_49 : i32 to vector<1x128xi32>
      %162 = arith.cmpi eq, %157, %161 : vector<1x128xi32>
      %163 = vector.extract %156[0, 0] : f32 from vector<1x1xf32>
      %cst_50 = arith.constant 0.000000e+00 : f32
      %164 = vector.broadcast %163 : f32 to vector<1x128xf32>
      %165 = vector.broadcast %cst_50 : f32 to vector<1x128xf32>
      %166 = arith.select %162, %164, %165 : vector<1x128xi1>, vector<1x128xf32>
      %167 = vector.broadcast %160 : f32 to vector<1x128xf32>
      %168 = arith.select %159, %167, %166 : vector<1x128xi1>, vector<1x128xf32>
      %c0_51 = arith.constant 0 : index
      %c0_52 = arith.constant 0 : index
      %169 = vector.load %arg9[%c0_51, %c0_52] : memref<1x128xf32, #tpu.memory_space<vmem>>, vector<1x128xf32>
      tpu.vector_store %arg9[%c0_51, %c0_52], %168 {strides = array<i32>} : memref<1x128xf32, #tpu.memory_space<vmem>>, vector<1x128xf32>,
    } else {
    }
    return
  }
  func.func @transform_0(%arg0: i32) -> (i32, i32) {
    %c0_i32 = arith.constant 0 : i32
    %c0_i32_0 = arith.constant 0 : i32
    %c0_i32_1 = arith.constant 0 : i32
    return %c0_i32, %c0_i32_0 : i32, i32
  }
  func.func @transform_1(%arg0: i32) -> (i32, i32) {
    %c0_i32 = arith.constant 0 : i32
    %0 = arith.minsi %arg0, %c0_i32 : i32
    %c0_i32_0 = arith.constant 0 : i32
    %c0_i32_1 = arith.constant 0 : i32
    return %c0_i32_0, %0 : i32, i32
  }
  func.func @transform_2(%arg0: i32) -> (i32, i32) {
    %c1_i32 = arith.constant 1 : i32
    %0 = arith.subi %arg0, %c1_i32 : i32
    %c0_i32 = arith.constant 0 : i32
    %1 = arith.maxsi %0, %c0_i32 : i32
    %c0_i32_0 = arith.constant 0 : i32
    %c0_i32_1 = arith.constant 0 : i32
    return %c0_i32_0, %1 : i32, i32
  }
  func.func @transform_3(%arg0: i32) -> (i32, i32) {
    %c0_i32 = arith.constant 0 : i32
    %0 = arith.minsi %arg0, %c0_i32 : i32
    %c0_i32_0 = arith.constant 0 : i32
    %c0_i32_1 = arith.constant 0 : i32
    return %c0_i32_0, %0 : i32, i32
  }
  func.func @transform_4(%arg0: i32) -> (i32, i32) {
    %c1_i32 = arith.constant 1 : i32
    %0 = arith.subi %arg0, %c1_i32 : i32
    %c0_i32 = arith.constant 0 : i32
    %1 = arith.maxsi %0, %c0_i32 : i32
    %c0_i32_0 = arith.constant 0 : i32
    %c0_i32_1 = arith.constant 0 : i32
    return %c0_i32_0, %1 : i32, i32
  }
  func.func @transform_5(%arg0: i32) -> (i32, i32) {
    %c0_i32 = arith.constant 0 : i32
    %c0_i32_0 = arith.constant 0 : i32
    %c0_i32_1 = arith.constant 0 : i32
    return %c0_i32, %c0_i32_0 : i32, i32
  }
  func.func @transform_6(%arg0: i32) -> (i32, i32) {
    %c0_i32 = arith.constant 0 : i32
    %0 = arith.minsi %arg0, %c0_i32 : i32
    %c0_i32_0 = arith.constant 0 : i32
    %c0_i32_1 = arith.constant 0 : i32
    return %c0_i32_0, %0 : i32, i32
  }
  func.func @transform_7(%arg0: i32) -> (i32, i32) {
    %c1_i32 = arith.constant 1 : i32
    %0 = arith.subi %arg0, %c1_i32 : i32
    %c0_i32 = arith.constant 0 : i32
    %1 = arith.maxsi %0, %c0_i32 : i32
    %c0_i32_0 = arith.constant 0 : i32
    %c0_i32_1 = arith.constant 0 : i32
    return %c0_i32_0, %1 : i32, i32
  }
  func.func @transform_8(%arg0: i32) -> (i32, i32) {
    %c0_i32 = arith.constant 0 : i32
    %c0_i32_0 = arith.constant 0 : i32
    %c0_i32_1 = arith.constant 0 : i32
    return %c0_i32, %c0_i32_0 : i32, i32
  }
}

</mosaic_0001>

<llo_original>
// kernel: tpu_custom_call.1
$region0: #{tpu_custom_call.1}
  #allocation0 [shape = 'u32[]', space=smem, size = 0x4, offset = 0x4, fixed_abs, tag = 'smem constant byte address 0x4 - core index']
  #allocation1 [shape = 'u32[144,128]{1,0:T(1,128)}', space=vmem, size = 0x12000, scoped, tag = 'internal scratch']
  #allocation2 [shape = 'f32[1,1]{1,0:T(1,128)}', space=vmem, size = 0x200, scoped, tag = 'scratch operand']
  #allocation3 [shape = 'f32[1,1]{1,0:T(1,128)}', space=vmem, size = 0x200, scoped, tag = 'scratch operand']
  #allocation4 [shape = 'f32[16,1]{1,0:T(8,128)}', space=vmem, size = 0x2000, scoped, tag = 'scratch operand']
  #allocation5 [shape = 'f32[16,1]{1,0:T(8,128)}', space=vmem, size = 0x2000, scoped, tag = 'scratch operand']
  #allocation6 [shape = 'f32[16,1]{1,0:T(8,128)}', space=vmem, size = 0x2000, scoped, tag = 'scratch operand']
  %s0 = inlined_call_operand.vmem [shape: bf16[16,128], index: 0, kind: input, shape index: {}]
  %s1 = inlined_call_operand.hbm [shape: bf16[128,128], index: 1, kind: input, shape index: {}]
  %s2 = inlined_call_operand.hbm [shape: bf16[128,128], index: 2, kind: input, shape index: {}]
  %s3 = inlined_call_operand.vmem [shape: bf16[16,128], index: 3, kind: input, shape index: {}]
  %s4 = inlined_call_operand.vmem [shape: bf16[16,128], index: 4, kind: input, shape index: {}]
  %s5 = inlined_call_operand.vmem [shape: s32[16,1], index: 5, kind: input, shape index: {}]
  %s6 = inlined_call_operand.hbm [shape: f32[16,128], index: 6, kind: output, shape index: {0}]
  %s7 = inlined_call_operand.hbm [shape: f32[16,128], index: 7, kind: output, shape index: {1}]
  %s8 = inlined_call_operand.hbm [shape: f32[1,128], index: 8, kind: output, shape index: {2}]
  %9 = xla_tuple %s6, %s7, %s8
  %s10 = sld [smem:[#allocation0]]
  $region97: #{tpu_custom_call.1} parent=0
    _
  %s12 = ssub.s32 1, %s10
  %s13 = scalar_select 0, %s12, %s10
  $region1: #{tpu_custom_call.1} parent=0
    #allocation7 [shape = 'u8[65536]{0}', space=vmem, size = 0x10000, scoped, tag = 'input window, operand 1']
    #allocation8 [shape = 's32[2]{0}', space=sflag, size = 0x8, scoped, tag = 'scoped memory for tpu_custom_call.1']
    #allocation9 [shape = 's32[2]{0}', space=sflag, size = 0x8, scoped, tag = 'scoped memory for tpu_custom_call.1']
    #allocation10 [shape = 'u8[65536]{0}', space=vmem, size = 0x10000, scoped, tag = 'input window, operand 2']
    #allocation11 [shape = 's32[2]{0}', space=sflag, size = 0x8, scoped, tag = 'scoped memory for tpu_custom_call.1']
    #allocation12 [shape = 'u8[16384]{0}', space=vmem, size = 0x4000, scoped, tag = 'output window, operand 0']
    #allocation13 [shape = 'u8[16384]{0}', space=vmem, size = 0x4000, scoped, tag = 'output window, operand 1']
    #allocation14 [shape = 's32[2]{0}', space=sflag, size = 0x8, scoped, tag = 'scoped memory for tpu_custom_call.1']
    #allocation15 [shape = 'u8[512]{0}', space=vmem, size = 0x400, scoped, tag = 'output window, operand 2, single buffered']
    %14 = vsyncpa [#allocation8], 0
    %s15 = scalar_lea.sflag [#allocation8], 1
    %16 = vsyncpa %s15, 0
    %17 = vsyncpa [#allocation11], 0
    %s18 = scalar_lea.sflag [#allocation11], 1
    %19 = vsyncpa %s18, 0
    %20 = vsyncpa [#allocation9], 0
    %s21 = scalar_lea.sflag [#allocation9], 1
    %22 = vsyncpa %s21, 0
    %23 = vsyncpa [#allocation14], 0
    %s24 = scalar_lea.sflag [#allocation14], 1
    %25 = vsyncpa %s24, 0
    loop: start=0, step=1, limit=4
    $region2: #{tpu_custom_call.1} parent=1 // loop_pre_header
      _
    $region3: #{tpu_custom_call.1} parent=1 // loop_header
      %s27 = sphi 0, %s31
      %p28 = scmp.ge.s32.totalorder %s27, 4
      %s35 = sphi 0, %s35
      %s37 = sphi 0, %s35
      %s38 = sphi 0, %s37
      %s52 = sphi 0, %s38
      %s62 = sphi 0, %s64
      %s65 = sphi 0, %s62
      %s66 = sphi 0, %s65
      %s82 = sphi 0, %s66
      %s94 = sphi 0, %s96
      %s97 = sphi 0, %s94
      %s98 = sphi 0, %s97
      %s114 = sphi 0, %s98
      %s124 = sphi 0, %s126
      %s127 = sphi 0, %s124
      %s128 = sphi 0, %s127
      %s144 = sphi 0, %s128
      %s156 = sphi 0, %s158
      %s159 = sphi 0, %s156
      %s160 = sphi 0, %s159
      %s176 = sphi 0, %s160
      %s180 = sphi 0, %s180
      %s182 = sphi 0, %s180
      %s183 = sphi 0, %s182
      %s197 = sphi 0, %s183
      %s207 = sphi 0, %s209
      %s210 = sphi 0, %s207
      %s211 = sphi 0, %s210
      %s227 = sphi 0, %s211
      %s239 = sphi 0, %s241
      %s242 = sphi 0, %s239
      %s243 = sphi 0, %s242
      %s259 = sphi 0, %s243
      %s263 = sphi 0, %s263
      %s265 = sphi 0, %s263
      %s266 = sphi 0, %s265
      %s280 = sphi 0, %s266
    $region4: #{tpu_custom_call.1} parent=1 // loop_header_branch
      %30 = sbr.rel (%p28) target = $region8
    $region5: #{tpu_custom_call.1} parent=1 // loop_body
      %s32 = ssub.s32 %s27, 1
      %s33 = ssub.s32 %s27, 2
      %s34 = sadd.s32 %s27, 1
      %s36 = sadd.s32 %s35, 1
      %p39 = scmp.eq.s32.totalorder %s27, 1
      %p40 = scmp.ne.s32.totalorder %s35, %s37
      %p41 = scmp.eq.s32.totalorder %s27, 0
      %p42 = por %p40, %p41
      %p43 = scmp.ne.s32.totalorder %s35, %s37
      %p44 = scmp.eq.s32.totalorder %s32, 1
      %p45 = por %p43, %p44
      %p46 = scmp.ne.s32.totalorder %s37, %s38
      %p47 = scmp.eq.s32.totalorder %s32, 0
      %p48 = por %p46, %p47
      %p49 = scmp.ne.s32.totalorder %s37, %s38
      %p50 = scmp.eq.s32.totalorder %s33, 1
      %p51 = por %p49, %p50
      %p53 = scmp.ne.s32.totalorder %s38, %s52
      %p54 = scmp.eq.s32.totalorder %s33, 0
      %p55 = por %p53, %p54
      %p56 = scmp.lt.s32.totalorder %s27, 0
      %s57 = scalar_select %p56, %s27, 0
      %p58 = scmp.lt.s32.totalorder %s34, 0
      %s59 = scalar_select %p58, %s34, 0
      %s60 = ssub.s32 %s57, %s59
      %p61 = scmp.eq.s32.totalorder %s60, 0
      %s63 = sadd.s32 %s62, 1
      %s64 = scalar_select %p61, %s62, %s63
      %p67 = pneg %p61
      %p68 = scmp.eq.s32.totalorder %s27, 1
      %p69 = por %p67, %p68
      %p70 = scmp.ne.s32.totalorder %s62, %s65
      %p71 = scmp.eq.s32.totalorder %s27, 0
      %p72 = por %p70, %p71
      %p73 = scmp.ne.s32.totalorder %s62, %s65
      %p74 = scmp.eq.s32.totalorder %s32, 1
      %p75 = por %p73, %p74
      %p76 = scmp.ne.s32.totalorder %s65, %s66
      %p77 = scmp.eq.s32.totalorder %s32, 0
      %p78 = por %p76, %p77
      %p79 = scmp.ne.s32.totalorder %s65, %s66
      %p80 = scmp.eq.s32.totalorder %s33, 1
      %p81 = por %p79, %p80
      %p83 = scmp.ne.s32.totalorder %s66, %s82
      %p84 = scmp.eq.s32.totalorder %s33, 0
      %p85 = por %p83, %p84
      %s86 = ssub.s32 %s27, 1
      %p87 = scmp.gt.s32.totalorder %s86, 0
      %s88 = scalar_select %p87, %s86, 0
      %s89 = ssub.s32 %s34, 1
      %p90 = scmp.gt.s32.totalorder %s89, 0
      %s91 = scalar_select %p90, %s89, 0
      %s92 = ssub.s32 %s88, %s91
      %p93 = scmp.eq.s32.totalorder %s92, 0
      %s95 = sadd.s32 %s94, 1
      %s96 = scalar_select %p93, %s94, %s95
      %p99 = pneg %p93
      %p100 = scmp.eq.s32.totalorder %s27, 1
      %p101 = por %p99, %p100
      %p102 = scmp.ne.s32.totalorder %s94, %s97
      %p103 = scmp.eq.s32.totalorder %s27, 0
      %p104 = por %p102, %p103
      %p105 = scmp.ne.s32.totalorder %s94, %s97
      %p106 = scmp.eq.s32.totalorder %s32, 1
      %p107 = por %p105, %p106
      %p108 = scmp.ne.s32.totalorder %s97, %s98
      %p109 = scmp.eq.s32.totalorder %s32, 0
      %p110 = por %p108, %p109
      %p111 = scmp.ne.s32.totalorder %s97, %s98
      %p112 = scmp.eq.s32.totalorder %s33, 1
      %p113 = por %p111, %p112
      %p115 = scmp.ne.s32.totalorder %s98, %s114
      %p116 = scmp.eq.s32.totalorder %s33, 0
      %p117 = por %p115, %p116
      %p118 = scmp.lt.s32.totalorder %s27, 0
      %s119 = scalar_select %p118, %s27, 0
      %p120 = scmp.lt.s32.totalorder %s34, 0
      %s121 = scalar_select %p120, %s34, 0
      %s122 = ssub.s32 %s119, %s121
      %p123 = scmp.eq.s32.totalorder %s122, 0
      %s125 = sadd.s32 %s124, 1
      %s126 = scalar_select %p123, %s124, %s125
      %p129 = pneg %p123
      %p130 = scmp.eq.s32.totalorder %s27, 1
      %p131 = por %p129, %p130
      %p132 = scmp.ne.s32.totalorder %s124, %s127
      %p133 = scmp.eq.s32.totalorder %s27, 0
      %p134 = por %p132, %p133
      %p135 = scmp.ne.s32.totalorder %s124, %s127
      %p136 = scmp.eq.s32.totalorder %s32, 1
      %p137 = por %p135, %p136
      %p138 = scmp.ne.s32.totalorder %s127, %s128
      %p139 = scmp.eq.s32.totalorder %s32, 0
      %p140 = por %p138, %p139
      %p141 = scmp.ne.s32.totalorder %s127, %s128
      %p142 = scmp.eq.s32.totalorder %s33, 1
      %p143 = por %p141, %p142
      %p145 = scmp.ne.s32.totalorder %s128, %s144
      %p146 = scmp.eq.s32.totalorder %s33, 0
      %p147 = por %p145, %p146
      %s148 = ssub.s32 %s27, 1
      %p149 = scmp.gt.s32.totalorder %s148, 0
      %s150 = scalar_select %p149, %s148, 0
      %s151 = ssub.s32 %s34, 1
      %p152 = scmp.gt.s32.totalorder %s151, 0
      %s153 = scalar_select %p152, %s151, 0
      %s154 = ssub.s32 %s150, %s153
      %p155 = scmp.eq.s32.totalorder %s154, 0
      %s157 = sadd.s32 %s156, 1
      %s158 = scalar_select %p155, %s156, %s157
      %p161 = pneg %p155
      %p162 = scmp.eq.s32.totalorder %s27, 1
      %p163 = por %p161, %p162
      %p164 = scmp.ne.s32.totalorder %s156, %s159
      %p165 = scmp.eq.s32.totalorder %s27, 0
      %p166 = por %p164, %p165
      %p167 = scmp.ne.s32.totalorder %s156, %s159
      %p168 = scmp.eq.s32.totalorder %s32, 1
      %p169 = por %p167, %p168
      %p170 = scmp.ne.s32.totalorder %s159, %s160
      %p171 = scmp.eq.s32.totalorder %s32, 0
      %p172 = por %p170, %p171
      %p173 = scmp.ne.s32.totalorder %s159, %s160
      %p174 = scmp.eq.s32.totalorder %s33, 1
      %p175 = por %p173, %p174
      %p177 = scmp.ne.s32.totalorder %s160, %s176
      %p178 = scmp.eq.s32.totalorder %s33, 0
      %p179 = por %p177, %p178
      %s181 = sadd.s32 %s180, 1
      %p184 = scmp.eq.s32.totalorder %s27, 1
      %p185 = scmp.ne.s32.totalorder %s180, %s182
      %p186 = scmp.eq.s32.totalorder %s27, 0
      %p187 = por %p185, %p186
      %p188 = scmp.ne.s32.totalorder %s180, %s182
      %p189 = scmp.eq.s32.totalorder %s32, 1
      %p190 = por %p188, %p189
      %p191 = scmp.ne.s32.totalorder %s182, %s183
      %p192 = scmp.eq.s32.totalorder %s32, 0
      %p193 = por %p191, %p192
      %p194 = scmp.ne.s32.totalorder %s182, %s183
      %p195 = scmp.eq.s32.totalorder %s33, 1
      %p196 = por %p194, %p195
      %p198 = scmp.ne.s32.totalorder %s183, %s197
      %p199 = scmp.eq.s32.totalorder %s33, 0
      %p200 = por %p198, %p199
      %p201 = scmp.lt.s32.totalorder %s27, 0
      %s202 = scalar_select %p201, %s27, 0
      %p203 = scmp.lt.s32.totalorder %s34, 0
      %s204 = scalar_select %p203, %s34, 0
      %s205 = ssub.s32 %s202, %s204
      %p206 = scmp.eq.s32.totalorder %s205, 0
      %s208 = sadd.s32 %s207, 1
      %s209 = scalar_select %p206, %s207, %s208
      %p212 = pneg %p206
      %p213 = scmp.eq.s32.totalorder %s27, 1
      %p214 = por %p212, %p213
      %p215 = scmp.ne.s32.totalorder %s207, %s210
      %p216 = scmp.eq.s32.totalorder %s27, 0
      %p217 = por %p215, %p216
      %p218 = scmp.ne.s32.totalorder %s207, %s210
      %p219 = scmp.eq.s32.totalorder %s32, 1
      %p220 = por %p218, %p219
      %p221 = scmp.ne.s32.totalorder %s210, %s211
      %p222 = scmp.eq.s32.totalorder %s32, 0
      %p223 = por %p221, %p222
      %p224 = scmp.ne.s32.totalorder %s210, %s211
      %p225 = scmp.eq.s32.totalorder %s33, 1
      %p226 = por %p224, %p225
      %p228 = scmp.ne.s32.totalorder %s211, %s227
      %p229 = scmp.eq.s32.totalorder %s33, 0
      %p230 = por %p228, %p229
      %s231 = ssub.s32 %s27, 1
      %p232 = scmp.gt.s32.totalorder %s231, 0
      %s233 = scalar_select %p232, %s231, 0
      %s234 = ssub.s32 %s34, 1
      %p235 = scmp.gt.s32.totalorder %s234, 0
      %s236 = scalar_select %p235, %s234, 0
      %s237 = ssub.s32 %s233, %s236
      %p238 = scmp.eq.s32.totalorder %s237, 0
      %s240 = sadd.s32 %s239, 1
      %s241 = scalar_select %p238, %s239, %s240
      %p244 = pneg %p238
      %p245 = scmp.eq.s32.totalorder %s27, 1
      %p246 = por %p244, %p245
      %p247 = scmp.ne.s32.totalorder %s239, %s242
      %p248 = scmp.eq.s32.totalorder %s27, 0
      %p249 = por %p247, %p248
      %p250 = scmp.ne.s32.totalorder %s239, %s242
      %p251 = scmp.eq.s32.totalorder %s32, 1
      %p252 = por %p250, %p251
      %p253 = scmp.ne.s32.totalorder %s242, %s243
      %p254 = scmp.eq.s32.totalorder %s32, 0
      %p255 = por %p253, %p254
      %p256 = scmp.ne.s32.totalorder %s242, %s243
      %p257 = scmp.eq.s32.totalorder %s33, 1
      %p258 = por %p256, %p257
      %p260 = scmp.ne.s32.totalorder %s243, %s259
      %p261 = scmp.eq.s32.totalorder %s33, 0
      %p262 = por %p260, %p261
      %s264 = sadd.s32 %s263, 1
      %p267 = scmp.eq.s32.totalorder %s27, 1
      %p268 = scmp.ne.s32.totalorder %s263, %s265
      %p269 = scmp.eq.s32.totalorder %s27, 0
      %p270 = por %p268, %p269
      %p271 = scmp.ne.s32.totalorder %s263, %s265
      %p272 = scmp.eq.s32.totalorder %s32, 1
      %p273 = por %p271, %p272
      %p274 = scmp.ne.s32.totalorder %s265, %s266
      %p275 = scmp.eq.s32.totalorder %s32, 0
      %p276 = por %p274, %p275
      %p277 = scmp.ne.s32.totalorder %s265, %s266
      %p278 = scmp.eq.s32.totalorder %s33, 1
      %p279 = por %p277, %p278
      %p281 = scmp.ne.s32.totalorder %s266, %s280
      %p282 = scmp.eq.s32.totalorder %s33, 0
      %p283 = por %p281, %p282
      %p284 = scmp.le.s32.totalorder 1, %s27
      %p285 = scmp.lt.s32.totalorder %s27, 3
      %p286 = pnand %p284, %p285
      %p287 = pneg %p286
      // Predicated region
      $region9: #{tpu_custom_call.1} parent=5 // pred_check
        _
      $region10: #{tpu_custom_call.1} parent=5 // pred_check_branch
        %289 = sbr.rel (%p286) target = $region12
      $region11: #{tpu_custom_call.1} parent=5 // pred_region
        %s290 = ssub.s32 %s27, 1
        // Predicated region
        $region13: #{tpu_custom_call.1} parent=11 // pred_check
          %p291 = pneg %p48
        $region14: #{tpu_custom_call.1} parent=11 // pred_check_branch
          %293 = sbr.rel (%p291) target = $region16
        $region15: #{tpu_custom_call.1} parent=11 // pred_region
          _
        $region16: #{tpu_custom_call.1} parent=11 // pred_fallthru
          _
        // Predicated region
        $region17: #{tpu_custom_call.1} parent=11 // pred_check
          %p294 = pneg %p193
        $region18: #{tpu_custom_call.1} parent=11 // pred_check_branch
          %296 = sbr.rel (%p294) target = $region20
        $region19: #{tpu_custom_call.1} parent=11 // pred_region
          _
        $region20: #{tpu_custom_call.1} parent=11 // pred_fallthru
          _
      $region12: #{tpu_custom_call.1} parent=5 // pred_fallthru
        _
      %p297 = scmp.lt.s32.totalorder %s27, 2
      // Predicated region
      $region21: #{tpu_custom_call.1} parent=5 // pred_check
        %p298 = pneg %p297
      $region22: #{tpu_custom_call.1} parent=5 // pred_check_branch
        %300 = sbr.rel (%p298) target = $region24
      $region23: #{tpu_custom_call.1} parent=5 // pred_region
        // Predicated region
        $region25: #{tpu_custom_call.1} parent=23 // pred_check
          %p301 = pneg %p72
        $region26: #{tpu_custom_call.1} parent=23 // pred_check_branch
          %303 = sbr.rel (%p301) target = $region28
        $region27: #{tpu_custom_call.1} parent=23 // pred_region
          %s304 = sand.u32 %s62, 1
          %s305 = scalar_lea.sflag [#allocation8], %s304
          %s306 = sand.u32 %s62, 1
          %s307 = smul.addr %s306, 64
          %s308 = scalar_lea.vmem [#allocation7], %s307
          %p309 = scmp.lt.s32.totalorder %s27, 0
          %s310 = scalar_select %p309, %s27, 0
          %s312 = ssub.s32 1024, 1024
          %313 = vsyncadd %s305, %s312
          %s314 = smul.addr %s310, 64
          %s315 = scalar_lea.hbm %s1, %s314
          %s316 = sshll.u32 %s308, 4
          %s317 = int_to_ptr.vmem [resolvable:$true] %s316
          %322 = dma.hbm_to_vmem [thread:$0]  %s315, 1024, %s317, %s305, 64, 64, 4
        $region28: #{tpu_custom_call.1} parent=23 // pred_fallthru
          _
        // Predicated region
        $region29: #{tpu_custom_call.1} parent=23 // pred_check
          %p323 = pneg %p104
        $region30: #{tpu_custom_call.1} parent=23 // pred_check_branch
          %325 = sbr.rel (%p323) target = $region32
        $region31: #{tpu_custom_call.1} parent=23 // pred_region
          %s326 = sand.u32 %s94, 1
          %s327 = scalar_lea.sflag [#allocation11], %s326
          %s328 = sand.u32 %s94, 1
          %s329 = smul.addr %s328, 64
          %s330 = scalar_lea.vmem [#allocation10], %s329
          %s331 = ssub.s32 %s27, 1
          %p332 = scmp.gt.s32.totalorder %s331, 0
          %s333 = scalar_select %p332, %s331, 0
          %s335 = ssub.s32 1024, 1024
          %336 = vsyncadd %s327, %s335
          %s337 = smul.addr %s333, 64
          %s338 = scalar_lea.hbm %s2, %s337
          %s339 = sshll.u32 %s330, 4
          %s340 = int_to_ptr.vmem [resolvable:$true] %s339
          %345 = dma.hbm_to_vmem [thread:$0]  %s338, 1024, %s340, %s327, 64, 64, 4
        $region32: #{tpu_custom_call.1} parent=23 // pred_fallthru
          _
        // Predicated region
        $region33: #{tpu_custom_call.1} parent=23 // pred_check
          %p346 = pneg %p134
        $region34: #{tpu_custom_call.1} parent=23 // pred_check_branch
          %348 = sbr.rel (%p346) target = $region36
        $region35: #{tpu_custom_call.1} parent=23 // pred_region
          %p349 = scmp.lt.s32.totalorder %s27, 0
          %s350 = scalar_select %p349, %s27, 0
          %p351 = scmp.lt.s32.totalorder %s350, 0
          %s352 = scalar_select %p351, %s350, 0
          %s353 = smul.addr %s352, 4
          %s354 = scalar_lea.vmem %s3, %s353
          %p355 = scmp.lt.s32.totalorder %s27, 0
          %s356 = scalar_select %p355, %s27, 0
        $region36: #{tpu_custom_call.1} parent=23 // pred_fallthru
          _
        // Predicated region
        $region37: #{tpu_custom_call.1} parent=23 // pred_check
          %p357 = pneg %p166
        $region38: #{tpu_custom_call.1} parent=23 // pred_check_branch
          %359 = sbr.rel (%p357) target = $region40
        $region39: #{tpu_custom_call.1} parent=23 // pred_region
          %s360 = ssub.s32 %s27, 1
          %p361 = scmp.gt.s32.totalorder %s360, 0
          %s362 = scalar_select %p361, %s360, 0
          %p363 = scmp.lt.s32.totalorder %s362, 0
          %s364 = scalar_select %p363, %s362, 0
          %s365 = smul.addr %s364, 4
          %s366 = scalar_lea.vmem %s4, %s365
          %s367 = ssub.s32 %s27, 1
          %p368 = scmp.gt.s32.totalorder %s367, 0
          %s369 = scalar_select %p368, %s367, 0
        $region40: #{tpu_custom_call.1} parent=23 // pred_fallthru
          _
      $region24: #{tpu_custom_call.1} parent=5 // pred_fallthru
        _
      %p370 = scmp.le.s32.totalorder 1, %s27
      %p371 = scmp.lt.s32.totalorder %s27, 3
      %p372 = pnand %p370, %p371
      %p373 = pneg %p372
      // Predicated region
      $region41: #{tpu_custom_call.1} parent=5 // pred_check
        _
      $region42: #{tpu_custom_call.1} parent=5 // pred_check_branch
        %375 = sbr.rel (%p372) target = $region44
      $region43: #{tpu_custom_call.1} parent=5 // pred_region
        %s376 = ssub.s32 %s27, 1
        %s377 = sand.u32 %s65, 1
        %s378 = scalar_lea.sflag [#allocation8], %s377
        %s379 = sand.u32 %s65, 1
        %s380 = smul.addr %s379, 64
        %s381 = scalar_lea.vmem [#allocation7], %s380
        // Predicated region
        $region45: #{tpu_custom_call.1} parent=43 // pred_check
          %p382 = pneg %p78
        $region46: #{tpu_custom_call.1} parent=43 // pred_check_branch
          %384 = sbr.rel (%p382) target = $region48
        $region47: #{tpu_custom_call.1} parent=43 // pred_region
          %385 = dma.done %s378, 1024
        $region48: #{tpu_custom_call.1} parent=43 // pred_fallthru
          _
        %s386 = sand.u32 %s97, 1
        %s387 = scalar_lea.sflag [#allocation11], %s386
        %s388 = sand.u32 %s97, 1
        %s389 = smul.addr %s388, 64
        %s390 = scalar_lea.vmem [#allocation10], %s389
        // Predicated region
        $region49: #{tpu_custom_call.1} parent=43 // pred_check
          %p391 = pneg %p110
        $region50: #{tpu_custom_call.1} parent=43 // pred_check_branch
          %393 = sbr.rel (%p391) target = $region52
        $region51: #{tpu_custom_call.1} parent=43 // pred_region
          %394 = dma.done %s387, 1024
        $region52: #{tpu_custom_call.1} parent=43 // pred_fallthru
          _
        %p395 = pneg %p48
        %p396 = pneg %p45
        %s397 = sand.u32 %s65, 1
        %s398 = scalar_lea.sflag [#allocation8], %s397
        %s399 = sand.u32 %s65, 1
        %s400 = smul.addr %s399, 64
        %s401 = scalar_lea.vmem [#allocation7], %s400
        %p402 = pneg %p78
        %p403 = pneg %p75
        %s404 = sand.u32 %s97, 1
        %s405 = scalar_lea.sflag [#allocation11], %s404
        %s406 = sand.u32 %s97, 1
        %s407 = smul.addr %s406, 64
        %s408 = scalar_lea.vmem [#allocation10], %s407
        %p409 = pneg %p110
        %p410 = pneg %p107
        %p411 = scmp.lt.s32.totalorder %s32, 0
        %s412 = scalar_select %p411, %s32, 0
        %p413 = scmp.lt.s32.totalorder %s412, 0
        %s414 = scalar_select %p413, %s412, 0
        %s415 = smul.addr %s414, 4
        %s416 = scalar_lea.vmem %s3, %s415
        %p417 = pneg %p140
        %p418 = pneg %p137
        %s419 = ssub.s32 %s32, 1
        %p420 = scmp.gt.s32.totalorder %s419, 0
        %s421 = scalar_select %p420, %s419, 0
        %p422 = scmp.lt.s32.totalorder %s421, 0
        %s423 = scalar_select %p422, %s421, 0
        %s424 = smul.addr %s423, 4
        %s425 = scalar_lea.vmem %s4, %s424
        %p426 = pneg %p172
        %p427 = pneg %p169
        %p428 = pneg %p193
        %p429 = pneg %p190
        %p430 = pneg %p223
        %p431 = pneg %p220
        %s432 = sand.u32 %s210, 1
        %s433 = scalar_lea.sflag [#allocation9], %s432
        %s434 = sand.u32 %s210, 1
        %s435 = smul.addr %s434, 16
        %s436 = scalar_lea.vmem [#allocation12], %s435
        %p437 = pneg %p255
        %p438 = pneg %p252
        %s439 = sand.u32 %s32, 1
        %s440 = scalar_lea.sflag [#allocation14], %s439
        %s441 = sand.u32 %s242, 1
        %s442 = smul.addr %s441, 16
        %s443 = scalar_lea.vmem [#allocation13], %s442
        %p444 = pneg %p276
        %p445 = pneg %p273
        %p446 = scmp.lt.s32.totalorder %s32, 0
        %s447 = scalar_select %p446, %s32, 0
        %s448 = ssub.s32 %s32, 1
        %p449 = scmp.gt.s32.totalorder %s448, 0
        %s450 = scalar_select %p449, %s448, 0
        %p451 = scmp.lt.s32.totalorder %s32, 0
        %s452 = scalar_select %p451, %s32, 0
        %p453 = scmp.lt.s32.totalorder %s452, 0
        %s454 = scalar_select %p453, %s452, 0
        %s455 = smul.addr %s454, 4
        %s456 = scalar_lea.vmem %s3, %s455
        %p457 = scmp.lt.s32.totalorder %s32, 0
        %s458 = scalar_select %p457, %s32, 0
        %s459 = ssub.s32 %s32, 1
        %p460 = scmp.gt.s32.totalorder %s459, 0
        %s461 = scalar_select %p460, %s459, 0
        %p462 = scmp.lt.s32.totalorder %s461, 0
        %s463 = scalar_select %p462, %s461, 0
        %s464 = smul.addr %s463, 4
        %s465 = scalar_lea.vmem %s4, %s464
        %s466 = ssub.s32 %s32, 1
        %p467 = scmp.gt.s32.totalorder %s466, 0
        %s468 = scalar_select %p467, %s466, 0
        %p469 = scmp.lt.s32.totalorder %s32, 0
        %s470 = scalar_select %p469, %s32, 0
        %s471 = ssub.s32 %s32, 1
        %p472 = scmp.gt.s32.totalorder %s471, 0
        %s473 = scalar_select %p472, %s471, 0
        %p475 = scmp.eq.s32.totalorder %s32, 0
        // Predicated region
        $region53: #{tpu_custom_call.1} parent=43 // pred_check
          %p476 = pneg %p475
        $region54: #{tpu_custom_call.1} parent=43 // pred_check_branch
          %478 = sbr.rel (%p476) target = $region56
        $region55: #{tpu_custom_call.1} parent=43 // pred_region
          %vm479 = vcmask 0
          %480 = vst.msk [vmem:[#allocation2] sm:$0x1] %vm479, 0.0
          %481 = vst.msk [vmem:[#allocation3] sm:$0x1] %vm479, 0.0
          %vm482 = vcmask 7168
          %483 = vst.msk [vmem:[#allocation4] sm:$0xff] %vm482, 0.0
          %484 = vst.msk [vmem:[#allocation4 + $0x8] sm:$0xff] %vm482, 0.0
          %485 = vst.msk [vmem:[#allocation5] sm:$0xff] %vm482, -1e+30
          %486 = vst.msk [vmem:[#allocation5 + $0x8] sm:$0xff] %vm482, -1e+30
          %487 = vst.msk [vmem:[#allocation6] sm:$0xff] %vm482, 0.0
          %488 = vst.msk [vmem:[#allocation6 + $0x8] sm:$0xff] %vm482, 0.0
        $region56: #{tpu_custom_call.1} parent=43 // pred_fallthru
          _
        %v489 = vld [vmem:[%s0] sm:$0xf]
        %v490 = vld [vmem:[%s0 + $0x4] sm:$0xf]
        %v491 = vlaneseq
        %v492 = vshrl.u32 %v491, 7
        %v493 = vadd.s32 %v492, 8
        %vm494 = vcmp.lt.s32.totalorder %v492, 8
        %vm495 = vcmp.lt.s32.totalorder %v493, 8
        %p496 = scmp.lt.s32.totalorder %s32, 1
        // Predicated region
        $region57: #{tpu_custom_call.1} parent=43 // pred_check
          %p497 = pneg %p496
        $region58: #{tpu_custom_call.1} parent=43 // pred_check_branch
          %499 = sbr.rel (%p497) target = $region60
        $region59: #{tpu_custom_call.1} parent=43 // pred_region
          %v500 = vld [vmem:[%s381] sm:$0xf]
          %v501 = vld [vmem:[%s381 + $0x4] sm:$0xf]
          %v502 = vld [vmem:[%s381 + $0x8] sm:$0xf]
          %v503 = vld [vmem:[%s381 + $0xc] sm:$0xf]
          %v504 = vld [vmem:[%s381 + $0x10] sm:$0xf]
          %v505 = vld [vmem:[%s381 + $0x14] sm:$0xf]
          %v506 = vld [vmem:[%s381 + $0x18] sm:$0xf]
          %v507 = vld [vmem:[%s381 + $0x1c] sm:$0xf]
          %v508 = vld [vmem:[%s381 + $0x20] sm:$0xf]
          %v509 = vld [vmem:[%s381 + $0x24] sm:$0xf]
          %v510 = vld [vmem:[%s381 + $0x28] sm:$0xf]
          %v511 = vld [vmem:[%s381 + $0x2c] sm:$0xf]
          %v512 = vld [vmem:[%s381 + $0x30] sm:$0xf]
          %v513 = vld [vmem:[%s381 + $0x34] sm:$0xf]
          %v514 = vld [vmem:[%s381 + $0x38] sm:$0xf]
          %v515 = vld [vmem:[%s381 + $0x3c] sm:$0xf]
          %v518 = vunpack.c.l.b16 %v489
          %v519 = vunpack.c.l.b16 %v490
          %v520 = vpack.c.b16 %v519, %v518
          %v538 = vunpack.c.l.b16 %v500
          %v539 = vunpack.c.l.b16 %v501
          %v540 = vunpack.c.l.b16 %v502
          %v541 = vunpack.c.l.b16 %v503
          %v542 = vunpack.c.l.b16 %v504
          %v543 = vunpack.c.l.b16 %v505
          %v544 = vunpack.c.l.b16 %v506
          %v545 = vunpack.c.l.b16 %v507
          %v546 = vunpack.c.l.b16 %v508
          %v547 = vunpack.c.l.b16 %v509
          %v548 = vunpack.c.l.b16 %v510
          %v549 = vunpack.c.l.b16 %v511
          %v550 = vunpack.c.l.b16 %v512
          %v551 = vunpack.c.l.b16 %v513
          %v552 = vunpack.c.l.b16 %v514
          %v553 = vunpack.c.l.b16 %v515
          %v554 = vpack.c.b16 %v539, %v538
          %v555 = vpack.c.b16 %v541, %v540
          %v556 = vpack.c.b16 %v543, %v542
          %v557 = vpack.c.b16 %v545, %v544
          %v558 = vpack.c.b16 %v547, %v546
          %v559 = vpack.c.b16 %v549, %v548
          %v560 = vpack.c.b16 %v551, %v550
          %v561 = vpack.c.b16 %v553, %v552
          %570 = vmatprep.subr.bf16.mxu0 0
          %571 = vmatpush1.bf16.msra.mxu0 %v554
          %572 = vmatprep.subr.bf16.mxu0 0
          %573 = vmatpush1.bf16.msra.mxu0 %v555
          %574 = vmatprep.subr.bf16.mxu0 0
          %575 = vmatpush1.bf16.msra.mxu0 %v556
          %576 = vmatprep.subr.bf16.mxu0 0
          %577 = vmatpush1.bf16.msra.mxu0 %v557
          %578 = vmatprep.subr.bf16.mxu0 0
          %579 = vmatpush1.bf16.msra.mxu0 %v558
          %580 = vmatprep.subr.bf16.mxu0 0
          %581 = vmatpush1.bf16.msra.mxu0 %v559
          %582 = vmatprep.subr.bf16.mxu0 0
          %583 = vmatpush1.bf16.msra.mxu0 %v560
          %584 = vmatprep.subr.bf16.mxu0 0
          %585 = vmatpush1.bf16.msra.mxu0 %v561
          %586 = vmatprep.subr.bf16.mxu0 0
          %587 = vmatpush1.bf16.msra.mxu0 0
          %588 = vmatprep.subr.bf16.mxu0 0
          %589 = vmatpush1.bf16.msra.mxu0 0
          %590 = vmatprep.subr.bf16.mxu0 0
          %591 = vmatpush1.bf16.msra.mxu0 0
          %592 = vmatprep.subr.bf16.mxu0 0
          %593 = vmatpush1.bf16.msra.mxu0 0
          %594 = vmatprep.subr.bf16.mxu0 0
          %595 = vmatpush1.bf16.msra.mxu0 0
          %596 = vmatprep.subr.bf16.mxu0 0
          %597 = vmatpush1.bf16.msra.mxu0 0
          %598 = vmatprep.subr.bf16.mxu0 0
          %599 = vmatpush1.bf16.msra.mxu0 0
          %600 = vmatprep.subr.bf16.mxu0 0
          %601 = vmatpush1.bf16.msra.mxu0 0
          %602 = vmatprep.mubr.bf16.mxu0 0
          %603 = vmatmul.mubr.bf16.gmra.mrb[0].mxu0 %v520
          %v604 = vpop.f32.mrb[0].mxu0
          %v605 = vadd.f32 0.0, %v604
          %v606 = vpop.f32.mrb[0].mxu0
          %v607 = vpop.f32.mrb[0].mxu0
          %v608 = vadd.f32 0.0, %v607
          %v609 = vpop.f32.mrb[0].mxu0
          %610 = vdwg.mxu0
          %v611 = vmul.f32 %v605, 2.0
          %v612 = vmul.f32 %v608, 2.0
          %613 = vst [vmem:[%s436] sm:$0xff] %v611
          %614 = vst [vmem:[%s436 + $0x8] sm:$0xff] %v612
          %s615 = smul.u32 %s32, 128
          %v616 = vlaneseq
          %v617 = vand.u32 %v616, 127
          %v618 = vstv %s615
          %v619 = vadd.s32 %v618, %v617
          %vm620 = vcmp.lt.s32.totalorder %v619, 16
          %v621 = vsel %vm494, 1, 0
          %v622 = vsel %vm495, 1, 0
          %vm623 = vcmp.eq.s32.totalorder %v621, 1
          %vm624 = vcmp.eq.s32.totalorder %v622, 1
          %vm625 = vmand %vm620, %vm623
          %vm626 = vmand %vm620, %vm624
          %v627 = vld [vmem:[%s456] sm:$0xf]
          %v628 = vld [vmem:[%s456 + $0x4] sm:$0xf]
          %v629 = vunpack.c.l.bf16 %v627
          %v630 = vunpack.c.l.bf16 %v628
          %v631 = vsub.f32 0.0, %v611
          %v632 = vsub.f32 0.0, %v612
          %v633 = vmul.f32 %v631, 1.442695
          %v634 = vpow.pop %v633
          %v635 = vmul.f32 %v632, 1.442695
          %v636 = vpow.pop %v635
          %v637 = vadd.f32 %v634, 1.0
          %v638 = vadd.f32 %v636, 1.0
          %v639 = vrcp.pop %v637
          %v640 = vrcp.pop %v638
          %v641 = vsub.f32 1.0, %v639
          %v642 = vsub.f32 1.0, %v640
          %v643 = vadd.f32 %v641, 0.05
          %v644 = vadd.f32 %v642, 0.05
          %v645 = vmin.f32 %v643, 1.0
          %v646 = vmin.f32 %v644, 1.0
          %vm647 = vcmp.gt.f32.partialorder %v629, 0.5
          %vm648 = vcmp.gt.f32.partialorder %v630, 0.5
          %v649 = vsel %vm647, %v639, %v645
          %v650 = vsel %vm648, %v640, %v646
          %v651 = vmax.f32 %v649, 1e-08
          %v652 = vmax.f32 %v650, 1e-08
          %v653 = vlog2.pop %v651
          %v654 = vmul.f32 %v653, 0.6931472
          %v655 = vlog2.pop %v652
          %v656 = vmul.f32 %v655, 0.6931472
          %v657 = vmul.f32 %v639, %v629
          %v658 = vmul.f32 %v640, %v630
          %v659 = vsub.f32 1.0, %v657
          %v660 = vsub.f32 1.0, %v658
          %v661 = vsub.f32 1.0, %v629
          %v662 = vsub.f32 1.0, %v630
          %v663 = vmul.f32 %v645, %v661
          %v664 = vmul.f32 %v646, %v662
          %v665 = vsub.f32 %v659, %v663
          %v666 = vsub.f32 %v660, %v664
          %v667 = vmul.f32 %v665, %v665
          %v668 = vmul.f32 %v666, %v666
          %v669 = vmul.f32 %v667, %v667
          %v670 = vmul.f32 %v668, %v668
          %v671 = vsel %vm647, %v665, %v669
          %v672 = vsel %vm648, %v666, %v670
          %v673 = vmul.f32 %v654, %v671
          %v674 = vmul.f32 %v656, %v672
          %v675 = vsel %vm625, %v673, 0.0
          %v676 = vsel %vm626, %v674, 0.0
          %v677 = vld [vmem:[#allocation2] sm:$0x1]
          %v678 = vadd.f32 %v675, %v676
          %679 = vadd.xlane.f32.xlu0 %v678
          %v680 = vpop.xlane.xlu0 %679
          %v681 = vrot.slane %v680, 4
          %v682 = vadd.f32 %v680, %v681
          %v683 = vrot.slane %v682, 2
          %v684 = vadd.f32 %v682, %v683
          %v685 = vrot.slane %v684, 1
          %v686 = vadd.f32 %v684, %v685
          %s687 = vtos %v686
          %v688 = vstv %s687
          %v689 = vadd.f32 %v677, %v688
          %vm690 = vcmask 0
          %691 = vst.msk [vmem:[#allocation2] sm:$0x1] %vm690, %v689
        $region60: #{tpu_custom_call.1} parent=43 // pred_fallthru
          _
        %p692 = scmp.ge.s32.totalorder %s32, 1
        // Predicated region
        $region61: #{tpu_custom_call.1} parent=43 // pred_check
          %p693 = pneg %p692
        $region62: #{tpu_custom_call.1} parent=43 // pred_check_branch
          %695 = sbr.rel (%p693) target = $region64
        $region63: #{tpu_custom_call.1} parent=43 // pred_region
          %s696 = ssub.s32 %s32, 1
          %v697 = vld [vmem:[%s390] sm:$0xf]
          %v698 = vld [vmem:[%s390 + $0x4] sm:$0xf]
          %v699 = vld [vmem:[%s390 + $0x8] sm:$0xf]
          %v700 = vld [vmem:[%s390 + $0xc] sm:$0xf]
          %v701 = vld [vmem:[%s390 + $0x10] sm:$0xf]
          %v702 = vld [vmem:[%s390 + $0x14] sm:$0xf]
          %v703 = vld [vmem:[%s390 + $0x18] sm:$0xf]
          %v704 = vld [vmem:[%s390 + $0x1c] sm:$0xf]
          %v705 = vld [vmem:[%s390 + $0x20] sm:$0xf]
          %v706 = vld [vmem:[%s390 + $0x24] sm:$0xf]
          %v707 = vld [vmem:[%s390 + $0x28] sm:$0xf]
          %v708 = vld [vmem:[%s390 + $0x2c] sm:$0xf]
          %v709 = vld [vmem:[%s390 + $0x30] sm:$0xf]
          %v710 = vld [vmem:[%s390 + $0x34] sm:$0xf]
          %v711 = vld [vmem:[%s390 + $0x38] sm:$0xf]
          %v712 = vld [vmem:[%s390 + $0x3c] sm:$0xf]
          %v715 = vunpack.c.l.b16 %v489
          %v716 = vunpack.c.l.b16 %v490
          %v717 = vpack.c.b16 %v716, %v715
          %v735 = vunpack.c.l.b16 %v697
          %v736 = vunpack.c.l.b16 %v698
          %v737 = vunpack.c.l.b16 %v699
          %v738 = vunpack.c.l.b16 %v700
          %v739 = vunpack.c.l.b16 %v701
          %v740 = vunpack.c.l.b16 %v702
          %v741 = vunpack.c.l.b16 %v703
          %v742 = vunpack.c.l.b16 %v704
          %v743 = vunpack.c.l.b16 %v705
          %v744 = vunpack.c.l.b16 %v706
          %v745 = vunpack.c.l.b16 %v707
          %v746 = vunpack.c.l.b16 %v708
          %v747 = vunpack.c.l.b16 %v709
          %v748 = vunpack.c.l.b16 %v710
          %v749 = vunpack.c.l.b16 %v711
          %v750 = vunpack.c.l.b16 %v712
          %v751 = vpack.c.b16 %v736, %v735
          %v752 = vpack.c.b16 %v738, %v737
          %v753 = vpack.c.b16 %v740, %v739
          %v754 = vpack.c.b16 %v742, %v741
          %v755 = vpack.c.b16 %v744, %v743
          %v756 = vpack.c.b16 %v746, %v745
          %v757 = vpack.c.b16 %v748, %v747
          %v758 = vpack.c.b16 %v750, %v749
          %767 = vmatprep.subr.bf16.mxu0 0
          %768 = vmatpush1.bf16.msra.mxu0 %v751
          %769 = vmatprep.subr.bf16.mxu0 0
          %770 = vmatpush1.bf16.msra.mxu0 %v752
          %771 = vmatprep.subr.bf16.mxu0 0
          %772 = vmatpush1.bf16.msra.mxu0 %v753
          %773 = vmatprep.subr.bf16.mxu0 0
          %774 = vmatpush1.bf16.msra.mxu0 %v754
          %775 = vmatprep.subr.bf16.mxu0 0
          %776 = vmatpush1.bf16.msra.mxu0 %v755
          %777 = vmatprep.subr.bf16.mxu0 0
          %778 = vmatpush1.bf16.msra.mxu0 %v756
          %779 = vmatprep.subr.bf16.mxu0 0
          %780 = vmatpush1.bf16.msra.mxu0 %v757
          %781 = vmatprep.subr.bf16.mxu0 0
          %782 = vmatpush1.bf16.msra.mxu0 %v758
          %783 = vmatprep.subr.bf16.mxu0 0
          %784 = vmatpush1.bf16.msra.mxu0 0
          %785 = vmatprep.subr.bf16.mxu0 0
          %786 = vmatpush1.bf16.msra.mxu0 0
          %787 = vmatprep.subr.bf16.mxu0 0
          %788 = vmatpush1.bf16.msra.mxu0 0
          %789 = vmatprep.subr.bf16.mxu0 0
          %790 = vmatpush1.bf16.msra.mxu0 0
          %791 = vmatprep.subr.bf16.mxu0 0
          %792 = vmatpush1.bf16.msra.mxu0 0
          %793 = vmatprep.subr.bf16.mxu0 0
          %794 = vmatpush1.bf16.msra.mxu0 0
          %795 = vmatprep.subr.bf16.mxu0 0
          %796 = vmatpush1.bf16.msra.mxu0 0
          %797 = vmatprep.subr.bf16.mxu0 0
          %798 = vmatpush1.bf16.msra.mxu0 0
          %799 = vmatprep.mubr.bf16.mxu0 0
          %800 = vmatmul.mubr.bf16.gmra.mrb[0].mxu0 %v717
          %v801 = vpop.f32.mrb[0].mxu0
          %v802 = vadd.f32 0.0, %v801
          %v803 = vpop.f32.mrb[0].mxu0
          %v804 = vpop.f32.mrb[0].mxu0
          %v805 = vadd.f32 0.0, %v804
          %v806 = vpop.f32.mrb[0].mxu0
          %807 = vdwg.mxu0
          %v808 = vmul.f32 %v802, 2.0
          %v809 = vmul.f32 %v805, 2.0
          %810 = vst [vmem:[%s443] sm:$0xff] %v808
          %811 = vst [vmem:[%s443 + $0x8] sm:$0xff] %v809
          %s812 = smul.u32 %s696, 128
          %v813 = vlaneseq
          %v814 = vand.u32 %v813, 127
          %v815 = vstv %s812
          %v816 = vadd.s32 %v815, %v814
          %vm817 = vcmp.lt.s32.totalorder %v816, 16
          %v818 = vsel %vm494, 1, 0
          %v819 = vsel %vm495, 1, 0
          %vm820 = vcmp.eq.s32.totalorder %v818, 1
          %vm821 = vcmp.eq.s32.totalorder %v819, 1
          %vm822 = vmand %vm817, %vm820
          %vm823 = vmand %vm817, %vm821
          %v824 = vsel %vm822, %v808, -1e+30
          %v825 = vsel %vm823, %v809, -1e+30
          %826 = vmax.xlane.f32.xlu0 %v824
          %v827 = vpop.xlane.xlu0 %826
          %828 = vmax.xlane.f32.xlu0 %v825
          %v829 = vpop.xlane.xlu0 %828
          %v830 = vld [vmem:[#allocation5] sm:$0xff]
          %v831 = vld [vmem:[#allocation5 + $0x8] sm:$0xff]
          %v832 = vmax.f32 %v830, %v827
          %v833 = vmax.f32 %v831, %v829
          %835 = vset.pattern.permute.xlu0 0
          %836 = vperm.xlu0 %835, %v832
          %v837 = vpop.permute.xlu0 %836
          %840 = vset.pattern.permute.xlu0 0
          %841 = vperm.xlu0 %840, %v833
          %v842 = vpop.permute.xlu0 %841
          %v844 = vsub.f32 %v808, %v837
          %v845 = vsub.f32 %v809, %v842
          %v846 = vmul.f32 %v844, 1.442695
          %v847 = vpow.pop %v846
          %v848 = vmul.f32 %v845, 1.442695
          %v849 = vpow.pop %v848
          %v850 = vsel %vm822, %v847, 0.0
          %v851 = vsel %vm823, %v849, 0.0
          %852 = vadd.xlane.f32.xlu0 %v850
          %v853 = vpop.xlane.xlu0 %852
          %854 = vadd.xlane.f32.xlu0 %v851
          %v855 = vpop.xlane.xlu0 %854
          %v856 = vld [vmem:[#allocation6] sm:$0xff]
          %v857 = vld [vmem:[#allocation6 + $0x8] sm:$0xff]
          %v858 = vsub.f32 %v830, %v832
          %v859 = vsub.f32 %v831, %v833
          %v860 = vmul.f32 %v858, 1.442695
          %v861 = vpow.pop %v860
          %v862 = vmul.f32 %v859, 1.442695
          %v863 = vpow.pop %v862
          %v864 = vmul.f32 %v856, %v861
          %v865 = vmul.f32 %v857, %v863
          %v866 = vadd.f32 %v864, %v853
          %v867 = vadd.f32 %v865, %v855
          %vm868 = vcmask 7168
          %869 = vst.msk [vmem:[#allocation6] sm:$0xff] %vm868, %v866
          %870 = vst.msk [vmem:[#allocation6 + $0x8] sm:$0xff] %vm868, %v867
          %871 = vst.msk [vmem:[#allocation5] sm:$0xff] %vm868, %v832
          %872 = vst.msk [vmem:[#allocation5 + $0x8] sm:$0xff] %vm868, %v833
          %v873 = vld [vmem:[%s465] sm:$0xf]
          %v874 = vld [vmem:[%s465 + $0x4] sm:$0xf]
          %v875 = vunpack.c.l.bf16 %v873
          %v876 = vunpack.c.l.bf16 %v874
          %v877 = vld [vmem:[#allocation3] sm:$0x1]
          %v878 = vmul.f32 %v875, %v808
          %v879 = vmul.f32 %v876, %v809
          %v880 = vadd.f32 %v878, %v879
          %881 = vadd.xlane.f32.xlu0 %v880
          %v882 = vpop.xlane.xlu0 %881
          %v883 = vrot.slane %v882, 4
          %v884 = vadd.f32 %v882, %v883
          %v885 = vrot.slane %v884, 2
          %v886 = vadd.f32 %v884, %v885
          %v887 = vrot.slane %v886, 1
          %v888 = vadd.f32 %v886, %v887
          %s889 = vtos %v888
          %v890 = vstv %s889
          %v891 = vadd.f32 %v877, %v890
          %vm892 = vcmask 0
          %893 = vst.msk [vmem:[#allocation3] sm:$0x1] %vm892, %v891
          %v894 = vld [vmem:[#allocation4] sm:$0xff]
          %v895 = vld [vmem:[#allocation4 + $0x8] sm:$0xff]
          %896 = vadd.xlane.f32.xlu0 %v875
          %v897 = vpop.xlane.xlu0 %896
          %898 = vadd.xlane.f32.xlu0 %v876
          %v899 = vpop.xlane.xlu0 %898
          %v900 = vadd.f32 %v894, %v897
          %v901 = vadd.f32 %v895, %v899
          %902 = vst.msk [vmem:[#allocation4] sm:$0xff] %vm868, %v900
          %903 = vst.msk [vmem:[#allocation4 + $0x8] sm:$0xff] %vm868, %v901
        $region64: #{tpu_custom_call.1} parent=43 // pred_fallthru
          _
        %p904 = scmp.eq.s32.totalorder %s32, 1
        // Predicated region
        $region65: #{tpu_custom_call.1} parent=43 // pred_check
          %p905 = pneg %p904
        $region66: #{tpu_custom_call.1} parent=43 // pred_check_branch
          %907 = sbr.rel (%p905) target = $region68
        $region67: #{tpu_custom_call.1} parent=43 // pred_region
          %v908 = vsel %vm494, 1, 0
          %v909 = vsel %vm495, 1, 0
          %v910 = vcvt.s32.f32 %v908
          %v911 = vcvt.s32.f32 %v909
          %v912 = vld [vmem:[#allocation5] sm:$0xff]
          %v913 = vld [vmem:[#allocation5 + $0x8] sm:$0xff]
          %v914 = vld [vmem:[#allocation6] sm:$0xff]
          %v915 = vld [vmem:[#allocation6 + $0x8] sm:$0xff]
          %v916 = vmax.f32 %v914, 1e-30
          %v917 = vmax.f32 %v915, 1e-30
          %v918 = vlog2.pop %v916
          %v919 = vmul.f32 %v918, 0.6931472
          %v920 = vlog2.pop %v917
          %v921 = vmul.f32 %v920, 0.6931472
          %v922 = vadd.f32 %v912, %v919
          %v923 = vadd.f32 %v913, %v921
          %v924 = vsel %vm494, %v922, 0.0
          %v925 = vsel %vm495, %v923, 0.0
          %v926 = vld [vmem:[%s5] sm:$0xff]
          %v927 = vld [vmem:[%s5 + $0x8] sm:$0xff]
          %vm928 = vcmp.eq.s32.totalorder %v926, 1
          %vm929 = vcmp.eq.s32.totalorder %v927, 1
          %v930 = vsel %vm928, 1.0, 0.0
          %v931 = vsel %vm929, 1.0, 0.0
          %vm932 = vcmask 7168
          %v933 = vsel %vm932, %v930, 0.0
          %v934 = vsel %vm932, %v931, 0.0
          %v935 = vadd.f32 %v933, %v934
          %936 = vadd.xlane.f32.xlu0 %v935
          %v937 = vpop.xlane.xlu0 %936
          %v938 = vrot.slane %v937, 4
          %v939 = vadd.f32 %v937, %v938
          %v940 = vrot.slane %v939, 2
          %v941 = vadd.f32 %v939, %v940
          %v942 = vrot.slane %v941, 1
          %v943 = vadd.f32 %v941, %v942
          %s944 = vtos %v943
          %v945 = vstv %s944
          %vm946 = vcmp.eq.s32.totalorder %v926, 0
          %vm947 = vcmp.eq.s32.totalorder %v927, 0
          %v948 = vsel %vm946, 1.0, 0.0
          %v949 = vsel %vm947, 1.0, 0.0
          %v950 = vsel %vm932, %v948, 0.0
          %v951 = vsel %vm932, %v949, 0.0
          %v952 = vadd.f32 %v950, %v951
          %953 = vadd.xlane.f32.xlu0 %v952
          %v954 = vpop.xlane.xlu0 %953
          %v955 = vrot.slane %v954, 4
          %v956 = vadd.f32 %v954, %v955
          %v957 = vrot.slane %v956, 2
          %v958 = vadd.f32 %v956, %v957
          %v959 = vrot.slane %v958, 1
          %v960 = vadd.f32 %v958, %v959
          %s961 = vtos %v960
          %v962 = vstv %s961
          %v963 = vmul.f32 %v962, 0.1
          %v964 = vadd.f32 %v945, %v963
          %v965 = vlog2.pop %v964
          %v966 = vmul.f32 %v965, 0.6931472
          %s967 = vtos %v966
          %v968 = vadd.f32 %v924, 0.0
          %v969 = vadd.f32 %v925, 0.0
          %v970 = vmax.f32 %v968, 0.0
          %v971 = vmax.f32 %v969, 0.0
          %v972 = vmin.f32 %v968, 0.0
          %v973 = vmin.f32 %v969, 0.0
          %v974 = vmul.f32 %v972, 1.442695
          %v975 = vpow.pop %v974
          %v976 = vmul.f32 %v973, 1.442695
          %v977 = vpow.pop %v976
          %v978 = vmul.f32 %v910, %v975
          %v979 = vmul.f32 %v911, %v977
          %v980 = vsel %vm932, %v978, 0.0
          %v981 = vsel %vm932, %v979, 0.0
          %v982 = vadd.f32 %v980, %v981
          %983 = vadd.xlane.f32.xlu0 %v982
          %v984 = vpop.xlane.xlu0 %983
          %v985 = vrot.slane %v984, 4
          %v986 = vadd.f32 %v984, %v985
          %v987 = vrot.slane %v986, 2
          %v988 = vadd.f32 %v986, %v987
          %v989 = vrot.slane %v988, 1
          %v990 = vadd.f32 %v988, %v989
          %s991 = vtos %v990
          %v992 = vstv %s991
          %v993 = vsub.f32 0.0, %v970
          %v994 = vsub.f32 0.0, %v971
          %v995 = vlog2.pop %v992
          %v996 = vmul.f32 %v995, 0.6931472
          %v997 = vsub.f32 %v993, %v996
          %v998 = vsub.f32 %v994, %v996
          %v999 = vstv %s967
          %v1000 = vadd.f32 %v997, %v999
          %v1001 = vadd.f32 %v998, %v999
          %v1002 = vadd.f32 %v924, %v1000
          %v1003 = vadd.f32 %v925, %v1001
          %v1004 = vmax.f32 %v1002, 0.0
          %v1005 = vmax.f32 %v1003, 0.0
          %v1006 = vmin.f32 %v1002, 0.0
          %v1007 = vmin.f32 %v1003, 0.0
          %v1008 = vmul.f32 %v1006, 1.442695
          %v1009 = vpow.pop %v1008
          %v1010 = vmul.f32 %v1007, 1.442695
          %v1011 = vpow.pop %v1010
          %v1012 = vmul.f32 %v910, %v1009
          %v1013 = vmul.f32 %v911, %v1011
          %v1014 = vsel %vm932, %v1012, 0.0
          %v1015 = vsel %vm932, %v1013, 0.0
          %v1016 = vadd.f32 %v1014, %v1015
          %1017 = vadd.xlane.f32.xlu0 %v1016
          %v1018 = vpop.xlane.xlu0 %1017
          %v1019 = vrot.slane %v1018, 4
          %v1020 = vadd.f32 %v1018, %v1019
          %v1021 = vrot.slane %v1020, 2
          %v1022 = vadd.f32 %v1020, %v1021
          %v1023 = vrot.slane %v1022, 1
          %v1024 = vadd.f32 %v1022, %v1023
          %s1025 = vtos %v1024
          %v1026 = vstv %s1025
          %v1027 = vsub.f32 %v1000, %v1004
          %v1028 = vsub.f32 %v1001, %v1005
          %v1029 = vlog2.pop %v1026
          %v1030 = vmul.f32 %v1029, 0.6931472
          %v1031 = vsub.f32 %v1027, %v1030
          %v1032 = vsub.f32 %v1028, %v1030
          %v1033 = vadd.f32 %v1031, %v999
          %v1034 = vadd.f32 %v1032, %v999
          %v1035 = vadd.f32 %v924, %v1033
          %v1036 = vadd.f32 %v925, %v1034
          %v1037 = vmax.f32 %v1035, 0.0
          %v1038 = vmax.f32 %v1036, 0.0
          %v1039 = vmin.f32 %v1035, 0.0
          %v1040 = vmin.f32 %v1036, 0.0
          %v1041 = vmul.f32 %v1039, 1.442695
          %v1042 = vpow.pop %v1041
          %v1043 = vmul.f32 %v1040, 1.442695
          %v1044 = vpow.pop %v1043
          %v1045 = vmul.f32 %v910, %v1042
          %v1046 = vmul.f32 %v911, %v1044
          %v1047 = vsel %vm932, %v1045, 0.0
          %v1048 = vsel %vm932, %v1046, 0.0
          %v1049 = vadd.f32 %v1047, %v1048
          %1050 = vadd.xlane.f32.xlu0 %v1049
          %v1051 = vpop.xlane.xlu0 %1050
          %v1052 = vrot.slane %v1051, 4
          %v1053 = vadd.f32 %v1051, %v1052
          %v1054 = vrot.slane %v1053, 2
          %v1055 = vadd.f32 %v1053, %v1054
          %v1056 = vrot.slane %v1055, 1
          %v1057 = vadd.f32 %v1055, %v1056
          %s1058 = vtos %v1057
          %v1059 = vstv %s1058
          %v1060 = vsub.f32 %v1033, %v1037
          %v1061 = vsub.f32 %v1034, %v1038
          %v1062 = vlog2.pop %v1059
          %v1063 = vmul.f32 %v1062, 0.6931472
          %v1064 = vsub.f32 %v1060, %v1063
          %v1065 = vsub.f32 %v1061, %v1063
          %v1066 = vadd.f32 %v1064, %v999
          %v1067 = vadd.f32 %v1065, %v999
          %v1068 = vadd.f32 %v924, %v1066
          %v1069 = vadd.f32 %v925, %v1067
          %v1070 = vmax.f32 %v1068, 0.0
          %v1071 = vmax.f32 %v1069, 0.0
          %v1072 = vmin.f32 %v1068, 0.0
          %v1073 = vmin.f32 %v1069, 0.0
          %v1074 = vmul.f32 %v1072, 1.442695
          %v1075 = vpow.pop %v1074
          %v1076 = vmul.f32 %v1073, 1.442695
          %v1077 = vpow.pop %v1076
          %v1078 = vmul.f32 %v910, %v1075
          %v1079 = vmul.f32 %v911, %v1077
          %v1080 = vsel %vm932, %v1078, 0.0
          %v1081 = vsel %vm932, %v1079, 0.0
          %v1082 = vadd.f32 %v1080, %v1081
          %1083 = vadd.xlane.f32.xlu0 %v1082
          %v1084 = vpop.xlane.xlu0 %1083
          %v1085 = vrot.slane %v1084, 4
          %v1086 = vadd.f32 %v1084, %v1085
          %v1087 = vrot.slane %v1086, 2
          %v1088 = vadd.f32 %v1086, %v1087
          %v1089 = vrot.slane %v1088, 1
          %v1090 = vadd.f32 %v1088, %v1089
          %s1091 = vtos %v1090
          %v1092 = vstv %s1091
          %v1093 = vsub.f32 %v1066, %v1070
          %v1094 = vsub.f32 %v1067, %v1071
          %v1095 = vlog2.pop %v1092
          %v1096 = vmul.f32 %v1095, 0.6931472
          %v1097 = vsub.f32 %v1093, %v1096
          %v1098 = vsub.f32 %v1094, %v1096
          %v1099 = vadd.f32 %v1097, %v999
          %v1100 = vadd.f32 %v1098, %v999
          %v1101 = vadd.f32 %v924, %v1099
          %v1102 = vadd.f32 %v925, %v1100
          %v1103 = vmax.f32 %v1101, 0.0
          %v1104 = vmax.f32 %v1102, 0.0
          %v1105 = vmin.f32 %v1101, 0.0
          %v1106 = vmin.f32 %v1102, 0.0
          %v1107 = vmul.f32 %v1105, 1.442695
          %v1108 = vpow.pop %v1107
          %v1109 = vmul.f32 %v1106, 1.442695
          %v1110 = vpow.pop %v1109
          %v1111 = vmul.f32 %v910, %v1108
          %v1112 = vmul.f32 %v911, %v1110
          %v1113 = vsel %vm932, %v1111, 0.0
          %v1114 = vsel %vm932, %v1112, 0.0
          %v1115 = vadd.f32 %v1113, %v1114
          %1116 = vadd.xlane.f32.xlu0 %v1115
          %v1117 = vpop.xlane.xlu0 %1116
          %v1118 = vrot.slane %v1117, 4
          %v1119 = vadd.f32 %v1117, %v1118
          %v1120 = vrot.slane %v1119, 2
          %v1121 = vadd.f32 %v1119, %v1120
          %v1122 = vrot.slane %v1121, 1
          %v1123 = vadd.f32 %v1121, %v1122
          %s1124 = vtos %v1123
          %v1125 = vstv %s1124
          %v1126 = vsub.f32 %v1099, %v1103
          %v1127 = vsub.f32 %v1100, %v1104
          %v1128 = vlog2.pop %v1125
          %v1129 = vmul.f32 %v1128, 0.6931472
          %v1130 = vsub.f32 %v1126, %v1129
          %v1131 = vsub.f32 %v1127, %v1129
          %v1132 = vadd.f32 %v1130, %v999
          %v1133 = vadd.f32 %v1131, %v999
          %v1134 = vld [vmem:[#allocation3] sm:$0x1]
          %v1135 = vld [vmem:[#allocation4] sm:$0xff]
          %v1136 = vld [vmem:[#allocation4 + $0x8] sm:$0xff]
          %v1137 = vmul.f32 %v1135, %v1132
          %v1138 = vmul.f32 %v1136, %v1133
          %v1139 = vsel %vm932, %v1137, 0.0
          %v1140 = vsel %vm932, %v1138, 0.0
          %v1141 = vadd.f32 %v1139, %v1140
          %1142 = vadd.xlane.f32.xlu0 %v1141
          %v1143 = vpop.xlane.xlu0 %1142
          %v1144 = vrot.slane %v1143, 4
          %v1145 = vadd.f32 %v1143, %v1144
          %v1146 = vrot.slane %v1145, 2
          %v1147 = vadd.f32 %v1145, %v1146
          %v1148 = vrot.slane %v1147, 1
          %v1149 = vadd.f32 %v1147, %v1148
          %s1150 = vtos %v1149
          %v1151 = vstv %s1150
          %v1152 = vadd.f32 %v1134, %v1151
          %v1153 = vsub.f32 0.0, %v1152
          %v1154 = vld [vmem:[#allocation2] sm:$0x1]
          %v1155 = vsub.f32 0.0, %v1154
          %v1156 = vlaneseq
          %v1157 = vand.u32 %v1156, 127
          %vm1158 = vcmp.eq.s32.totalorder %v1157, 0
          %s1159 = vtos %v1153
          %vm1160 = vcmp.eq.s32.totalorder %v1157, 1
          %s1161 = vtos %v1155
          %v1162 = vstv %s1161
          %v1163 = vsel %vm1160, %v1162, 0.0
          %v1164 = vstv %s1159
          %v1165 = vsel %vm1158, %v1164, %v1163
          %1166 = vst [vmem:[#allocation15] sm:$0x1] %v1165
        $region68: #{tpu_custom_call.1} parent=43 // pred_fallthru
          _
        %s1167 = sand.u32 %s210, 1
        %s1168 = scalar_lea.sflag [#allocation9], %s1167
        %s1169 = sand.u32 %s210, 1
        %s1170 = smul.addr %s1169, 16
        %s1171 = scalar_lea.vmem [#allocation12], %s1170
        %s1172 = sand.u32 %s32, 1
        %s1173 = scalar_lea.sflag [#allocation14], %s1172
        %s1174 = sand.u32 %s242, 1
        %s1175 = smul.addr %s1174, 16
        %s1176 = scalar_lea.vmem [#allocation13], %s1175
        // Predicated region
        $region69: #{tpu_custom_call.1} parent=43 // pred_check
          %p1177 = pneg %p220
        $region70: #{tpu_custom_call.1} parent=43 // pred_check_branch
          %1179 = sbr.rel (%p1177) target = $region72
        $region71: #{tpu_custom_call.1} parent=43 // pred_region
          %p1180 = scmp.lt.s32.totalorder %s32, 0
          %s1181 = scalar_select %p1180, %s32, 0
          %s1183 = ssub.s32 256, 256
          %1184 = vsyncadd %s1168, %s1183
          %s1185 = smul.addr %s1181, 128
          %s1186 = scalar_lea.hbm %s6, %s1185
          %s1187 = sshll.u32 %s1171, 4
          %s1188 = int_to_ptr.vmem [resolvable:$true] %s1187
          %1193 = dma.vmem_to_hbm [thread:$0]  %s1188, 256, %s1186, %s1168, 128, 128, 8
        $region72: #{tpu_custom_call.1} parent=43 // pred_fallthru
          _
        // Predicated region
        $region73: #{tpu_custom_call.1} parent=43 // pred_check
          %p1194 = pneg %p252
        $region74: #{tpu_custom_call.1} parent=43 // pred_check_branch
          %1196 = sbr.rel (%p1194) target = $region76
        $region75: #{tpu_custom_call.1} parent=43 // pred_region
          %s1197 = ssub.s32 %s32, 1
          %p1198 = scmp.gt.s32.totalorder %s1197, 0
          %s1199 = scalar_select %p1198, %s1197, 0
          %s1201 = ssub.s32 256, 256
          %1202 = vsyncadd %s1173, %s1201
          %s1203 = smul.addr %s1199, 128
          %s1204 = scalar_lea.hbm %s7, %s1203
          %s1205 = sshll.u32 %s1176, 4
          %s1206 = int_to_ptr.vmem [resolvable:$true] %s1205
          %1211 = dma.vmem_to_hbm [thread:$0]  %s1206, 256, %s1204, %s1173, 128, 128, 8
        $region76: #{tpu_custom_call.1} parent=43 // pred_fallthru
          _
        // Predicated region
        $region77: #{tpu_custom_call.1} parent=43 // pred_check
          %p1212 = pneg %p273
        $region78: #{tpu_custom_call.1} parent=43 // pred_check_branch
          %1214 = sbr.rel (%p1212) target = $region80
        $region79: #{tpu_custom_call.1} parent=43 // pred_region
          %s1216 = ssub.s32 16, 16
          %1217 = vsyncadd [#allocation14], %s1216
          %s1219 = sshll.u32 [#allocation15], 4
          %s1220 = int_to_ptr.vmem [resolvable:$true] %s1219
          %1222 = dma.vmem_to_hbm [thread:$0]  %s1220, 16, %s8, [#allocation14]
        $region80: #{tpu_custom_call.1} parent=43 // pred_fallthru
          _
        // Predicated region
        $region81: #{tpu_custom_call.1} parent=43 // pred_check
          %p1223 = pneg %p273
        $region82: #{tpu_custom_call.1} parent=43 // pred_check_branch
          %1225 = sbr.rel (%p1223) target = $region84
        $region83: #{tpu_custom_call.1} parent=43 // pred_region
          %1226 = dma.done [#allocation14], 16
        $region84: #{tpu_custom_call.1} parent=43 // pred_fallthru
          _
      $region44: #{tpu_custom_call.1} parent=5 // pred_fallthru
        _
      %p1227 = scmp.le.s32.totalorder 2, %s27
      // Predicated region
      $region85: #{tpu_custom_call.1} parent=5 // pred_check
        %p1228 = pneg %p1227
      $region86: #{tpu_custom_call.1} parent=5 // pred_check_branch
        %1230 = sbr.rel (%p1228) target = $region88
      $region87: #{tpu_custom_call.1} parent=5 // pred_region
        %s1231 = ssub.s32 %s27, 2
        // Predicated region
        $region89: #{tpu_custom_call.1} parent=87 // pred_check
          %p1232 = pneg %p226
        $region90: #{tpu_custom_call.1} parent=87 // pred_check_branch
          %1234 = sbr.rel (%p1232) target = $region92
        $region91: #{tpu_custom_call.1} parent=87 // pred_region
          %s1235 = sand.u32 %s211, 1
          %s1236 = scalar_lea.sflag [#allocation9], %s1235
          %s1237 = sand.u32 %s211, 1
          %s1238 = smul.addr %s1237, 16
          %s1239 = scalar_lea.vmem [#allocation12], %s1238
          %1240 = dma.done %s1236, 256
        $region92: #{tpu_custom_call.1} parent=87 // pred_fallthru
          _
        // Predicated region
        $region93: #{tpu_custom_call.1} parent=87 // pred_check
          %p1241 = pneg %p258
        $region94: #{tpu_custom_call.1} parent=87 // pred_check_branch
          %1243 = sbr.rel (%p1241) target = $region96
        $region95: #{tpu_custom_call.1} parent=87 // pred_region
          %s1244 = sand.u32 %s33, 1
          %s1245 = scalar_lea.sflag [#allocation14], %s1244
          %s1246 = sand.u32 %s243, 1
          %s1247 = smul.addr %s1246, 16
          %s1248 = scalar_lea.vmem [#allocation13], %s1247
          %1249 = dma.done %s1245, 256
        $region96: #{tpu_custom_call.1} parent=87 // pred_fallthru
          _
      $region88: #{tpu_custom_call.1} parent=5 // pred_fallthru
        _
    $region6: #{tpu_custom_call.1} parent=1 // loop_footer
      %s31 = sadd.s32 1, %s27
    $region7: #{tpu_custom_call.1} parent=1 // loop_footer_branch
      %26 = sbr.rel target = $region3
    $region8: #{tpu_custom_call.1} parent=1 // loop_exit
      _
    %1250 = vsyncpa [#allocation8], 1
    %s1251 = scalar_lea.sflag [#allocation8], 1
    %1252 = vsyncpa %s1251, 1
    %1253 = vsyncpa [#allocation11], 1
    %s1254 = scalar_lea.sflag [#allocation11], 1
    %1255 = vsyncpa %s1254, 1
    %1256 = vsyncpa [#allocation9], 1
    %s1257 = scalar_lea.sflag [#allocation9], 1
    %1258 = vsyncpa %s1257, 1
    %1259 = vsyncpa [#allocation14], 1
    %s1260 = scalar_lea.sflag [#allocation14], 1
    %1261 = vsyncpa %s1260, 1

</llo_original>
